<compile_context>
chip_gen: v5e
topology: v5e:2x2
jax: 0.10.0
libtpu: 0.0.40
codegen_flags: <defaults>
</compile_context>

<pallas_src>
import functools
import math

import jax
import jax.numpy as jnp
from jax import lax
from jax.experimental import pallas as pl
from jax.experimental.pallas import tpu as pltpu


def _layer_norm(h, gamma, beta, eps):
    mean = jnp.mean(h, axis=-1, keepdims=True)
    var = jnp.mean((h - mean) ** 2, axis=-1, keepdims=True)
    return (h - mean) * lax.rsqrt(var + eps) * gamma + beta


def _transformer_block_kernel(
    x_ref,                       # (Bb, S, D) activations
    wqkv_ref, bqkv_ref,          # (D, 3D) bf16 , (1, 3D) f32  (Q part pre-scaled by 1/sqrt(d_k))
    wo_ref, bo_ref,              # (D, D)  bf16 , (1, D)  f32
    g1_ref, be1_ref,             # LayerNorm1 gamma/beta, f32
    w1_ref, b1_ref,              # (D, F)  bf16 , (1, F)  f32
    w2_ref, b2_ref,              # (F, D)  bf16 , (1, D)  f32
    g2_ref, be2_ref,             # LayerNorm2 gamma/beta, f32
    o_ref,                       # (Bb, S, D) output
    ctx_ref,                     # VMEM scratch (Bb*S, D) f32: attention context
    *, num_heads: int, d_k: int, eps: float,
):
    f32, bf16 = jnp.float32, jnp.bfloat16
    Bb, S, D = x_ref.shape
    M = Bb * S

    x = x_ref[...].astype(f32).reshape(M, D)     # f32 for residual / LayerNorm
    xb = x.astype(bf16)                          # bf16 operands for the MXU

    # ---- fused QKV projection: one (M, D) @ (D, 3D) MXU pass -----------------
    qkv = jnp.dot(xb, wqkv_ref[...], preferred_element_type=f32) + bqkv_ref[...]
    q = qkv[:, 0 * D:1 * D].astype(bf16)         # already scaled by 1/sqrt(d_k)
    k = qkv[:, 1 * D:2 * D].astype(bf16)
    v = qkv[:, 2 * D:3 * D].astype(bf16)

    # ---- attention: batched-over-batch contraction, one head at a time --------
    # Statically unrolled head loop; each head's result is written directly into
    # its lane slice of the VMEM ctx scratch (no python list / lane concat).
    for h in range(num_heads):
        sl = slice(h * d_k, (h + 1) * d_k)
        qh = q[:, sl].reshape(Bb, S, d_k)
        kh = k[:, sl].reshape(Bb, S, d_k)
        vh = v[:, sl].reshape(Bb, S, d_k)
        s = jnp.einsum("bqd,bkd->bqk", qh, kh, preferred_element_type=f32)
        s = s - jnp.max(s, axis=-1, keepdims=True)          # f32 softmax
        p = jnp.exp(s)
        p = p * pl.reciprocal(jnp.sum(p, axis=-1, keepdims=True), approx=True)
        ctx = jnp.einsum("bqk,bkd->bqd", p.astype(bf16), vh,
                         preferred_element_type=f32)
        ctx_ref[:, sl] = ctx.reshape(M, d_k)
    # TODO(synk): optional attention `mask` (masked_fill with -1e9) not implemented; mask=None only.
    # TODO(synk): for long S, use a flash-style online softmax over KV tiles instead of the
    #             full (S, S) score matrix per head.

    attn = jnp.dot(ctx_ref[...].astype(bf16), wo_ref[...],
                   preferred_element_type=f32) + bo_ref[...]

    # ---- residual + LayerNorm 1 (dropout = identity in eval mode) -------------
    h1 = _layer_norm(x + attn, g1_ref[...], be1_ref[...], eps)

    # ---- FFN: Linear -> ReLU -> Linear ----------------------------------------
    # TODO(synk): for very large d_ff on v7x, tile the hidden dim F with an inner reduction
    #             pipeline instead of keeping both FFN weights fully resident.
    ff = jnp.dot(h1.astype(bf16), w1_ref[...], preferred_element_type=f32) + b1_ref[...]
    ff = jnp.maximum(ff, 0.0)
    ff = jnp.dot(ff.astype(bf16), w2_ref[...], preferred_element_type=f32) + b2_ref[...]

    # ---- residual + LayerNorm 2 ------------------------------------------------
    out = _layer_norm(h1 + ff, g2_ref[...], be2_ref[...], eps)
    o_ref[...] = out.reshape(Bb, S, D).astype(o_ref.dtype)


def prepare_transformer_params(params, *, num_heads: int):
    """One-time param prep: fuse QKV, fold 1/sqrt(d_k) into Q, cast weights to bf16.

    Input `params` holds f32 weights stored as (in_features, out_features)
    (transpose of PyTorch nn.Linear storage) and (1, out) biases.
    """
    bf16, f32 = jnp.bfloat16, jnp.float32
    D = params["wq"].shape[0]
    scale = 1.0 / math.sqrt(D // num_heads)
    wqkv = jnp.concatenate(
        [params["wq"] * scale, params["wk"], params["wv"]], axis=1).astype(bf16)
    bqkv = jnp.concatenate(
        [params["bq"] * scale, params["bk"], params["bv"]], axis=1).astype(f32)
    return {
        "wqkv": wqkv, "bqkv": bqkv,
        "wo": params["wo"].astype(bf16), "bo": params["bo"].astype(f32),
        "g1": params["g1"].astype(f32), "be1": params["be1"].astype(f32),
        "w1": params["w1"].astype(bf16), "b1": params["b1"].astype(f32),
        "w2": params["w2"].astype(bf16), "b2": params["b2"].astype(f32),
        "g2": params["g2"].astype(f32), "be2": params["be2"].astype(f32),
    }


def _pick_block_batch(B, S, target_rows=256, score_bytes_cap=8 << 20):
    """Smallest divisor of B giving Bb*S >= target_rows (MXU fill), capped so the
    per-head f32 (Bb, S, S) score tile stays well inside VMEM."""
    divisors = [d for d in range(1, B + 1) if B % d == 0]
    ok = [d for d in divisors if d * S * S * 4 <= score_bytes_cap]
    if not ok:
        return 1
    for d in ok:
        if d * S >= target_rows:
            return d
    return ok[-1]


def transformer_block_forward(x, prep, *, num_heads: int, eps: float = 1e-5,
                              block_batch=None):
    """x: (B, S, D) f32.  prep: output of prepare_transformer_params."""
    B, S, D = x.shape
    F = prep["w1"].shape[1]
    d_k = D // num_heads
    Bb = block_batch or _pick_block_batch(B, S)
    assert B % Bb == 0
    nb = B // Bb

    kernel = functools.partial(
        _transformer_block_kernel, num_heads=num_heads, d_k=d_k, eps=eps)

    # --- explicit VMEM budget sized to the resident set (conservative) ---------
    itemsize = jnp.dtype(x.dtype).itemsize
    w_bytes = (D * 3 * D + D * D + D * F + F * D) * 2            # bf16 weights
    p_bytes = (3 * D + D + F + 5 * D) * 4                        # f32 biases / LN params
    io_bytes = 2 * 2 * (Bb * S * D * itemsize)                   # x + out, double-buffered
    scratch_bytes = Bb * S * D * 4
    interm_bytes = (Bb * S * (3 * D + 4 * D + F) + 2 * Bb * S * S) * 4
    est = 2 * w_bytes + p_bytes + io_bytes + scratch_bytes + interm_bytes
    vmem_limit = int(min(max(2 * est, 32 << 20), 64 << 20))

    def _in_specs(weight_buffers):
        def full(shape):
            imap = lambda b, _n=len(shape): (0,) * _n            # constant -> resident
            if weight_buffers is None:
                return pl.BlockSpec(shape, imap)
            return pl.BlockSpec(shape, imap,
                                pipeline_mode=pl.Buffered(weight_buffers))
        return [
            pl.BlockSpec((Bb, S, D), lambda b: (b, 0, 0)),       # x (double-buffered)
            full((D, 3 * D)), full((1, 3 * D)),                  # wqkv, bqkv
            full((D, D)), full((1, D)),                          # wo, bo
            full((1, D)), full((1, D)),                          # norm1 gamma, beta
            full((D, F)), full((1, F)),                          # ffn w1, b1
            full((F, D)), full((1, D)),                          # ffn w2, b2
            full((1, D)), full((1, D)),                          # norm2 gamma, beta
        ]

    def _run(weight_buffers):
        return pl.pallas_call(
            kernel,
            out_shape=jax.ShapeDtypeStruct((B, S, D), x.dtype),
            grid=(nb,),
            in_specs=_in_specs(weight_buffers),
            out_specs=pl.BlockSpec((Bb, S, D), lambda b: (b, 0, 0)),
            scratch_shapes=[pltpu.VMEM((Bb * S, D), jnp.float32)],
            compiler_params=pltpu.CompilerParams(
                dimension_semantics=("parallel",),
                vmem_limit_bytes=vmem_limit,
            ),
        )(x, prep["wqkv"], prep["bqkv"], prep["wo"], prep["bo"],
          prep["g1"], prep["be1"], prep["w1"], prep["b1"],
          prep["w2"], prep["b2"], prep["g2"], prep["be2"])

    try:
        # Weights never change across the batch grid: single-buffer them so the
        # second (wasted) VMEM copy disappears — matters for real D/F on v7x.
        return _run(weight_buffers=1)
    except Exception:
        # TODO(synk): fall back to default double-buffering if this JAX build rejects
        # pl.Buffered(1) as a pipeline_mode on pallas_call inputs.
        return _run(weight_buffers=None)


# ---------------------------- pure-JAX reference ------------------------------
def transformer_block_ref(x, p, *, num_heads: int, eps: float = 1e-5):
    """Reference matching the PyTorch module (eval mode, mask=None), with bf16
    MXU-operand rounding to mirror the kernel's intentional quantization."""
    B, S, D = x.shape
    dk = D // num_heads
    bf16, f32 = jnp.bfloat16, jnp.float32

    def mm(a, b):
        return jnp.dot(a.astype(bf16), b.astype(bf16), preferred_element_type=f32)

    def ln(t, g, b):
        m = t.mean(-1, keepdims=True)
        v = ((t - m) ** 2).mean(-1, keepdims=True)
        return (t - m) * lax.rsqrt(v + eps) * g + b

    x = x.astype(f32)
    q = (mm(x, p["wq"]) + p["bq"]).reshape(B, S, num_heads, dk).transpose(0, 2, 1, 3)
    k = (mm(x, p["wk"]) + p["bk"]).reshape(B, S, num_heads, dk).transpose(0, 2, 1, 3)
    v = (mm(x, p["wv"]) + p["bv"]).reshape(B, S, num_heads, dk).transpose(0, 2, 1, 3)
    scores = jnp.einsum("bhqd,bhkd->bhqk", q.astype(bf16), k.astype(bf16),
                        preferred_element_type=f32) / math.sqrt(dk)
    attn = jax.nn.softmax(scores, axis=-1)
    o = jnp.einsum("bhqk,bhkd->bhqd", attn.astype(bf16), v.astype(bf16),
                   preferred_element_type=f32)
    o = o.transpose(0, 2, 1, 3).reshape(B, S, D)
    o = mm(o, p["wo"]) + p["bo"]
    h1 = ln(x + o, p["g1"], p["be1"])
    ff = mm(jnp.maximum(mm(h1, p["w1"]) + p["b1"], 0.0), p["w2"]) + p["b2"]
    return ln(h1 + ff, p["g2"], p["be2"])


if __name__ == "__main__":
    # Small shapes consistent with the module: batch=2, seq=8, d_model=32, heads=4, d_ff=64
    B, S, D, H, F = 2, 8, 32, 4, 64

    key = jax.random.PRNGKey(0)
    ks = jax.random.split(key, 18)

    def w(k, shape, scale=0.08):
        return (scale * jax.random.normal(k, shape)).astype(jnp.float32)

    params = {
        "wq": w(ks[0], (D, D)), "bq": w(ks[1], (1, D)),
        "wk": w(ks[2], (D, D)), "bk": w(ks[3], (1, D)),
        "wv": w(ks[4], (D, D)), "bv": w(ks[5], (1, D)),
        "wo": w(ks[6], (D, D)), "bo": w(ks[7], (1, D)),
        "g1": (1.0 + 0.1 * jax.random.normal(ks[8], (1, D))).astype(jnp.float32),
        "be1": w(ks[9], (1, D)),
        "w1": w(ks[10], (D, F)), "b1": w(ks[11], (1, F)),
        "w2": w(ks[12], (F, D)), "b2": w(ks[13], (1, D)),
        "g2": (1.0 + 0.1 * jax.random.normal(ks[14], (1, D))).astype(jnp.float32),
        "be2": w(ks[15], (1, D)),
    }
    x = jax.random.normal(ks[16], (B, S, D), dtype=jnp.float32)

    prep = prepare_transformer_params(params, num_heads=H)
    out = transformer_block_forward(x, prep, num_heads=H)
    out = jax.block_until_ready(out)

    ref = transformer_block_ref(x, params, num_heads=H)
    assert out.shape == (B, S, D)
    max_err = float(jnp.max(jnp.abs(out - ref)))
    assert max_err < 1e-2, f"max abs error {max_err}"

    print("KERNEL_OK")
</pallas_src>

<mosaic_0001>
module attributes {stable_mosaic.version = 11 : i64} {
  func.func @_transformer_block_kernel(%arg0: i32, %arg1: memref<2x8x32xf32, #tpu.memory_space<vmem>>, %arg2: memref<32x96xbf16, #tpu.memory_space<vmem>>, %arg3: memref<1x96xf32, #tpu.memory_space<vmem>>, %arg4: memref<32x32xbf16, #tpu.memory_space<vmem>>, %arg5: memref<1x32xf32, #tpu.memory_space<vmem>>, %arg6: memref<1x32xf32, #tpu.memory_space<vmem>>, %arg7: memref<1x32xf32, #tpu.memory_space<vmem>>, %arg8: memref<32x64xbf16, #tpu.memory_space<vmem>>, %arg9: memref<1x64xf32, #tpu.memory_space<vmem>>, %arg10: memref<64x32xbf16, #tpu.memory_space<vmem>>, %arg11: memref<1x32xf32, #tpu.memory_space<vmem>>, %arg12: memref<1x32xf32, #tpu.memory_space<vmem>>, %arg13: memref<1x32xf32, #tpu.memory_space<vmem>>, %arg14: memref<2x8x32xf32, #tpu.memory_space<vmem>>, %arg15: memref<16x32xf32, #tpu.memory_space<vmem>>) attributes {dimension_semantics = [#tpu.dimension_semantics<parallel>], iteration_bounds = array<i64: 1>, scalar_prefetch = 0 : i64, scratch_operands = 1 : i64, tpu.core_type = #tpu.core_type<tc>, window_params = [{transform_indices = @transform_0, window_bounds = array<i64: 2, 8, 32>}, {pipeline_mode = #tpu.pipeline_mode<synchronous>, transform_indices = @transform_1, window_bounds = array<i64: 32, 96>}, {pipeline_mode = #tpu.pipeline_mode<synchronous>, transform_indices = @transform_2, window_bounds = array<i64: 1, 96>}, {pipeline_mode = #tpu.pipeline_mode<synchronous>, transform_indices = @transform_3, window_bounds = array<i64: 32, 32>}, {pipeline_mode = #tpu.pipeline_mode<synchronous>, transform_indices = @transform_4, window_bounds = array<i64: 1, 32>}, {pipeline_mode = #tpu.pipeline_mode<synchronous>, transform_indices = @transform_5, window_bounds = array<i64: 1, 32>}, {pipeline_mode = #tpu.pipeline_mode<synchronous>, transform_indices = @transform_6, window_bounds = array<i64: 1, 32>}, {pipeline_mode = #tpu.pipeline_mode<synchronous>, transform_indices = @transform_7, window_bounds = array<i64: 32, 64>}, {pipeline_mode = #tpu.pipeline_mode<synchronous>, transform_indices = @transform_8, window_bounds = array<i64: 1, 64>}, {pipeline_mode = #tpu.pipeline_mode<synchronous>, transform_indices = @transform_9, window_bounds = array<i64: 64, 32>}, {pipeline_mode = #tpu.pipeline_mode<synchronous>, transform_indices = @transform_10, window_bounds = array<i64: 1, 32>}, {pipeline_mode = #tpu.pipeline_mode<synchronous>, transform_indices = @transform_11, window_bounds = array<i64: 1, 32>}, {pipeline_mode = #tpu.pipeline_mode<synchronous>, transform_indices = @transform_12, window_bounds = array<i64: 1, 32>}, {transform_indices = @transform_13, window_bounds = array<i64: 2, 8, 32>}]} {
    %c0 = arith.constant 0 : index
    %c0_0 = arith.constant 0 : index
    %c0_1 = arith.constant 0 : index
    %0 = vector.load %arg1[%c0, %c0_0, %c0_1] : memref<2x8x32xf32, #tpu.memory_space<vmem>>, vector<2x8x32xf32>
    %1 = vector.shape_cast %0 : vector<2x8x32xf32> to vector<16x32xf32>
    %2 = arith.truncf %1 : vector<16x32xf32> to vector<16x32xbf16>
    %c0_2 = arith.constant 0 : index
    %c0_3 = arith.constant 0 : index
    %3 = vector.load %arg2[%c0_2, %c0_3] : memref<32x96xbf16, #tpu.memory_space<vmem>>, vector<32x96xbf16>
    %cst = arith.constant dense<0.000000e+00> : vector<16x96xf32>
    %4 = tpu.matmul %2, %3, %cst {dimension_numbers = #tpu.dot_dimension_numbers<[1], [0], [0], [1], [0, 0, 1, 1], [], []>} : vector<16x32xbf16>, vector<32x96xbf16>, vector<16x96xf32> -> vector<16x96xf32>
    %c0_4 = arith.constant 0 : index
    %c0_5 = arith.constant 0 : index
    %5 = vector.load %arg3[%c0_4, %c0_5] : memref<1x96xf32, #tpu.memory_space<vmem>>, vector<1x96xf32>
    %6 = vector.broadcast %5 : vector<1x96xf32> to vector<16x96xf32>
    %7 = arith.addf %4, %6 : vector<16x96xf32>
    %8 = vector.extract_strided_slice %7 {offsets = [0, 0], sizes = [16, 32], strides = [1, 1]} : vector<16x96xf32> to vector<16x32xf32>
    %9 = arith.truncf %8 : vector<16x32xf32> to vector<16x32xbf16>
    %10 = vector.extract_strided_slice %7 {offsets = [0, 32], sizes = [16, 32], strides = [1, 1]} : vector<16x96xf32> to vector<16x32xf32>
    %11 = arith.truncf %10 : vector<16x32xf32> to vector<16x32xbf16>
    %12 = vector.extract_strided_slice %7 {offsets = [0, 64], sizes = [16, 32], strides = [1, 1]} : vector<16x96xf32> to vector<16x32xf32>
    %13 = arith.truncf %12 : vector<16x32xf32> to vector<16x32xbf16>
    %14 = vector.extract_strided_slice %9 {offsets = [0, 0], sizes = [16, 8], strides = [1, 1]} : vector<16x32xbf16> to vector<16x8xbf16>
    %15 = vector.shape_cast %14 : vector<16x8xbf16> to vector<2x8x8xbf16>
    %16 = vector.extract_strided_slice %11 {offsets = [0, 0], sizes = [16, 8], strides = [1, 1]} : vector<16x32xbf16> to vector<16x8xbf16>
    %17 = vector.shape_cast %16 : vector<16x8xbf16> to vector<2x8x8xbf16>
    %18 = vector.extract_strided_slice %13 {offsets = [0, 0], sizes = [16, 8], strides = [1, 1]} : vector<16x32xbf16> to vector<16x8xbf16>
    %19 = vector.shape_cast %18 : vector<16x8xbf16> to vector<2x8x8xbf16>
    "tpu.trace_start"() <{level = 10 : i32, message = "bqd,bkd->bqk"}> : () -> ()
    %cst_6 = arith.constant dense<0.000000e+00> : vector<2x8x8xf32>
    %20 = tpu.matmul %15, %17, %cst_6 {dimension_numbers = #tpu.dot_dimension_numbers<[2], [2], [1], [1], [0, 0, 0, 1, 1, 1], [0], [0]>} : vector<2x8x8xbf16>, vector<2x8x8xbf16>, vector<2x8x8xf32> -> vector<2x8x8xf32>
    "tpu.trace_stop"() : () -> ()
    %cst_7 = arith.constant dense<0xFF800000> : vector<2x8xf32>
    %21 = vector.multi_reduction <maximumf>, %20, %cst_7 [2] : vector<2x8x8xf32> to vector<2x8xf32>
    %22 = vector.shape_cast %21 : vector<2x8xf32> to vector<2x8x1xf32>
    %23 = vector.broadcast %22 : vector<2x8x1xf32> to vector<2x8x8xf32>
    %24 = arith.subf %20, %23 : vector<2x8x8xf32>
    %25 = math.exp %24 : vector<2x8x8xf32>
    %cst_8 = arith.constant dense<0.000000e+00> : vector<2x8xf32>
    %26 = vector.multi_reduction <add>, %25, %cst_8 [2] : vector<2x8x8xf32> to vector<2x8xf32>
    %27 = vector.shape_cast %26 : vector<2x8xf32> to vector<2x8x1xf32>
    %28 = tpu.reciprocal %27 {approx = true} : vector<2x8x1xf32> -> vector<2x8x1xf32>
    %29 = vector.broadcast %28 : vector<2x8x1xf32> to vector<2x8x8xf32>
    %30 = arith.mulf %25, %29 : vector<2x8x8xf32>
    %31 = arith.truncf %30 : vector<2x8x8xf32> to vector<2x8x8xbf16>
    "tpu.trace_start"() <{level = 10 : i32, message = "bqk,bkd->bqd"}> : () -> ()
    %cst_9 = arith.constant dense<0.000000e+00> : vector<2x8x8xf32>
    %32 = tpu.matmul %31, %19, %cst_9 {dimension_numbers = #tpu.dot_dimension_numbers<[2], [1], [1], [2], [0, 0, 0, 1, 1, 2], [0], [0]>} : vector<2x8x8xbf16>, vector<2x8x8xbf16>, vector<2x8x8xf32> -> vector<2x8x8xf32>
    "tpu.trace_stop"() : () -> ()
    %33 = vector.shape_cast %32 : vector<2x8x8xf32> to vector<16x8xf32>
    %c0_10 = arith.constant 0 : index
    %c0_11 = arith.constant 0 : index
    %34 = vector.load %arg15[%c0_10, %c0_11] : memref<16x32xf32, #tpu.memory_space<vmem>>, vector<16x8xf32>
    tpu.vector_store %arg15[%c0_10, %c0_11], %33 {strides = array<i32>} : memref<16x32xf32, #tpu.memory_space<vmem>>, vector<16x8xf32>,
    %35 = vector.extract_strided_slice %9 {offsets = [0, 8], sizes = [16, 8], strides = [1, 1]} : vector<16x32xbf16> to vector<16x8xbf16>
    %36 = vector.shape_cast %35 : vector<16x8xbf16> to vector<2x8x8xbf16>
    %37 = vector.extract_strided_slice %11 {offsets = [0, 8], sizes = [16, 8], strides = [1, 1]} : vector<16x32xbf16> to vector<16x8xbf16>
    %38 = vector.shape_cast %37 : vector<16x8xbf16> to vector<2x8x8xbf16>
    %39 = vector.extract_strided_slice %13 {offsets = [0, 8], sizes = [16, 8], strides = [1, 1]} : vector<16x32xbf16> to vector<16x8xbf16>
    %40 = vector.shape_cast %39 : vector<16x8xbf16> to vector<2x8x8xbf16>
    "tpu.trace_start"() <{level = 10 : i32, message = "bqd,bkd->bqk"}> : () -> ()
    %cst_12 = arith.constant dense<0.000000e+00> : vector<2x8x8xf32>
    %41 = tpu.matmul %36, %38, %cst_12 {dimension_numbers = #tpu.dot_dimension_numbers<[2], [2], [1], [1], [0, 0, 0, 1, 1, 1], [0], [0]>} : vector<2x8x8xbf16>, vector<2x8x8xbf16>, vector<2x8x8xf32> -> vector<2x8x8xf32>
    "tpu.trace_stop"() : () -> ()
    %cst_13 = arith.constant dense<0xFF800000> : vector<2x8xf32>
    %42 = vector.multi_reduction <maximumf>, %41, %cst_13 [2] : vector<2x8x8xf32> to vector<2x8xf32>
    %43 = vector.shape_cast %42 : vector<2x8xf32> to vector<2x8x1xf32>
    %44 = vector.broadcast %43 : vector<2x8x1xf32> to vector<2x8x8xf32>
    %45 = arith.subf %41, %44 : vector<2x8x8xf32>
    %46 = math.exp %45 : vector<2x8x8xf32>
    %cst_14 = arith.constant dense<0.000000e+00> : vector<2x8xf32>
    %47 = vector.multi_reduction <add>, %46, %cst_14 [2] : vector<2x8x8xf32> to vector<2x8xf32>
    %48 = vector.shape_cast %47 : vector<2x8xf32> to vector<2x8x1xf32>
    %49 = tpu.reciprocal %48 {approx = true} : vector<2x8x1xf32> -> vector<2x8x1xf32>
    %50 = vector.broadcast %49 : vector<2x8x1xf32> to vector<2x8x8xf32>
    %51 = arith.mulf %46, %50 : vector<2x8x8xf32>
    %52 = arith.truncf %51 : vector<2x8x8xf32> to vector<2x8x8xbf16>
    "tpu.trace_start"() <{level = 10 : i32, message = "bqk,bkd->bqd"}> : () -> ()
    %cst_15 = arith.constant dense<0.000000e+00> : vector<2x8x8xf32>
    %53 = tpu.matmul %52, %40, %cst_15 {dimension_numbers = #tpu.dot_dimension_numbers<[2], [1], [1], [2], [0, 0, 0, 1, 1, 2], [0], [0]>} : vector<2x8x8xbf16>, vector<2x8x8xbf16>, vector<2x8x8xf32> -> vector<2x8x8xf32>
    "tpu.trace_stop"() : () -> ()
    %54 = vector.shape_cast %53 : vector<2x8x8xf32> to vector<16x8xf32>
    %c0_16 = arith.constant 0 : index
    %c8 = arith.constant 8 : index
    %55 = vector.load %arg15[%c0_16, %c8] : memref<16x32xf32, #tpu.memory_space<vmem>>, vector<16x8xf32>
    tpu.vector_store %arg15[%c0_16, %c8], %54 {strides = array<i32>} : memref<16x32xf32, #tpu.memory_space<vmem>>, vector<16x8xf32>,
    %56 = vector.extract_strided_slice %9 {offsets = [0, 16], sizes = [16, 8], strides = [1, 1]} : vector<16x32xbf16> to vector<16x8xbf16>
    %57 = vector.shape_cast %56 : vector<16x8xbf16> to vector<2x8x8xbf16>
    %58 = vector.extract_strided_slice %11 {offsets = [0, 16], sizes = [16, 8], strides = [1, 1]} : vector<16x32xbf16> to vector<16x8xbf16>
    %59 = vector.shape_cast %58 : vector<16x8xbf16> to vector<2x8x8xbf16>
    %60 = vector.extract_strided_slice %13 {offsets = [0, 16], sizes = [16, 8], strides = [1, 1]} : vector<16x32xbf16> to vector<16x8xbf16>
    %61 = vector.shape_cast %60 : vector<16x8xbf16> to vector<2x8x8xbf16>
    "tpu.trace_start"() <{level = 10 : i32, message = "bqd,bkd->bqk"}> : () -> ()
    %cst_17 = arith.constant dense<0.000000e+00> : vector<2x8x8xf32>
    %62 = tpu.matmul %57, %59, %cst_17 {dimension_numbers = #tpu.dot_dimension_numbers<[2], [2], [1], [1], [0, 0, 0, 1, 1, 1], [0], [0]>} : vector<2x8x8xbf16>, vector<2x8x8xbf16>, vector<2x8x8xf32> -> vector<2x8x8xf32>
    "tpu.trace_stop"() : () -> ()
    %cst_18 = arith.constant dense<0xFF800000> : vector<2x8xf32>
    %63 = vector.multi_reduction <maximumf>, %62, %cst_18 [2] : vector<2x8x8xf32> to vector<2x8xf32>
    %64 = vector.shape_cast %63 : vector<2x8xf32> to vector<2x8x1xf32>
    %65 = vector.broadcast %64 : vector<2x8x1xf32> to vector<2x8x8xf32>
    %66 = arith.subf %62, %65 : vector<2x8x8xf32>
    %67 = math.exp %66 : vector<2x8x8xf32>
    %cst_19 = arith.constant dense<0.000000e+00> : vector<2x8xf32>
    %68 = vector.multi_reduction <add>, %67, %cst_19 [2] : vector<2x8x8xf32> to vector<2x8xf32>
    %69 = vector.shape_cast %68 : vector<2x8xf32> to vector<2x8x1xf32>
    %70 = tpu.reciprocal %69 {approx = true} : vector<2x8x1xf32> -> vector<2x8x1xf32>
    %71 = vector.broadcast %70 : vector<2x8x1xf32> to vector<2x8x8xf32>
    %72 = arith.mulf %67, %71 : vector<2x8x8xf32>
    %73 = arith.truncf %72 : vector<2x8x8xf32> to vector<2x8x8xbf16>
    "tpu.trace_start"() <{level = 10 : i32, message = "bqk,bkd->bqd"}> : () -> ()
    %cst_20 = arith.constant dense<0.000000e+00> : vector<2x8x8xf32>
    %74 = tpu.matmul %73, %61, %cst_20 {dimension_numbers = #tpu.dot_dimension_numbers<[2], [1], [1], [2], [0, 0, 0, 1, 1, 2], [0], [0]>} : vector<2x8x8xbf16>, vector<2x8x8xbf16>, vector<2x8x8xf32> -> vector<2x8x8xf32>
    "tpu.trace_stop"() : () -> ()
    %75 = vector.shape_cast %74 : vector<2x8x8xf32> to vector<16x8xf32>
    %c0_21 = arith.constant 0 : index
    %c16 = arith.constant 16 : index
    %76 = vector.load %arg15[%c0_21, %c16] : memref<16x32xf32, #tpu.memory_space<vmem>>, vector<16x8xf32>
    tpu.vector_store %arg15[%c0_21, %c16], %75 {strides = array<i32>} : memref<16x32xf32, #tpu.memory_space<vmem>>, vector<16x8xf32>,
    %77 = vector.extract_strided_slice %9 {offsets = [0, 24], sizes = [16, 8], strides = [1, 1]} : vector<16x32xbf16> to vector<16x8xbf16>
    %78 = vector.shape_cast %77 : vector<16x8xbf16> to vector<2x8x8xbf16>
    %79 = vector.extract_strided_slice %11 {offsets = [0, 24], sizes = [16, 8], strides = [1, 1]} : vector<16x32xbf16> to vector<16x8xbf16>
    %80 = vector.shape_cast %79 : vector<16x8xbf16> to vector<2x8x8xbf16>
    %81 = vector.extract_strided_slice %13 {offsets = [0, 24], sizes = [16, 8], strides = [1, 1]} : vector<16x32xbf16> to vector<16x8xbf16>
    %82 = vector.shape_cast %81 : vector<16x8xbf16> to vector<2x8x8xbf16>
    "tpu.trace_start"() <{level = 10 : i32, message = "bqd,bkd->bqk"}> : () -> ()
    %cst_22 = arith.constant dense<0.000000e+00> : vector<2x8x8xf32>
    %83 = tpu.matmul %78, %80, %cst_22 {dimension_numbers = #tpu.dot_dimension_numbers<[2], [2], [1], [1], [0, 0, 0, 1, 1, 1], [0], [0]>} : vector<2x8x8xbf16>, vector<2x8x8xbf16>, vector<2x8x8xf32> -> vector<2x8x8xf32>
    "tpu.trace_stop"() : () -> ()
    %cst_23 = arith.constant dense<0xFF800000> : vector<2x8xf32>
    %84 = vector.multi_reduction <maximumf>, %83, %cst_23 [2] : vector<2x8x8xf32> to vector<2x8xf32>
    %85 = vector.shape_cast %84 : vector<2x8xf32> to vector<2x8x1xf32>
    %86 = vector.broadcast %85 : vector<2x8x1xf32> to vector<2x8x8xf32>
    %87 = arith.subf %83, %86 : vector<2x8x8xf32>
    %88 = math.exp %87 : vector<2x8x8xf32>
    %cst_24 = arith.constant dense<0.000000e+00> : vector<2x8xf32>
    %89 = vector.multi_reduction <add>, %88, %cst_24 [2] : vector<2x8x8xf32> to vector<2x8xf32>
    %90 = vector.shape_cast %89 : vector<2x8xf32> to vector<2x8x1xf32>
    %91 = tpu.reciprocal %90 {approx = true} : vector<2x8x1xf32> -> vector<2x8x1xf32>
    %92 = vector.broadcast %91 : vector<2x8x1xf32> to vector<2x8x8xf32>
    %93 = arith.mulf %88, %92 : vector<2x8x8xf32>
    %94 = arith.truncf %93 : vector<2x8x8xf32> to vector<2x8x8xbf16>
    "tpu.trace_start"() <{level = 10 : i32, message = "bqk,bkd->bqd"}> : () -> ()
    %cst_25 = arith.constant dense<0.000000e+00> : vector<2x8x8xf32>
    %95 = tpu.matmul %94, %82, %cst_25 {dimension_numbers = #tpu.dot_dimension_numbers<[2], [1], [1], [2], [0, 0, 0, 1, 1, 2], [0], [0]>} : vector<2x8x8xbf16>, vector<2x8x8xbf16>, vector<2x8x8xf32> -> vector<2x8x8xf32>
    "tpu.trace_stop"() : () -> ()
    %96 = vector.shape_cast %95 : vector<2x8x8xf32> to vector<16x8xf32>
    %c0_26 = arith.constant 0 : index
    %c24 = arith.constant 24 : index
    %97 = vector.load %arg15[%c0_26, %c24] : memref<16x32xf32, #tpu.memory_space<vmem>>, vector<16x8xf32>
    tpu.vector_store %arg15[%c0_26, %c24], %96 {strides = array<i32>} : memref<16x32xf32, #tpu.memory_space<vmem>>, vector<16x8xf32>,
    %c0_27 = arith.constant 0 : index
    %c0_28 = arith.constant 0 : index
    %98 = vector.load %arg15[%c0_27, %c0_28] : memref<16x32xf32, #tpu.memory_space<vmem>>, vector<16x32xf32>
    %99 = arith.truncf %98 : vector<16x32xf32> to vector<16x32xbf16>
    %c0_29 = arith.constant 0 : index
    %c0_30 = arith.constant 0 : index
    %100 = vector.load %arg4[%c0_29, %c0_30] : memref<32x32xbf16, #tpu.memory_space<vmem>>, vector<32x32xbf16>
    %cst_31 = arith.constant dense<0.000000e+00> : vector<16x32xf32>
    %101 = tpu.matmul %99, %100, %cst_31 {dimension_numbers = #tpu.dot_dimension_numbers<[1], [0], [0], [1], [0, 0, 1, 1], [], []>} : vector<16x32xbf16>, vector<32x32xbf16>, vector<16x32xf32> -> vector<16x32xf32>
    %c0_32 = arith.constant 0 : index
    %c0_33 = arith.constant 0 : index
    %102 = vector.load %arg5[%c0_32, %c0_33] : memref<1x32xf32, #tpu.memory_space<vmem>>, vector<1x32xf32>
    %103 = vector.broadcast %102 : vector<1x32xf32> to vector<16x32xf32>
    %104 = arith.addf %101, %103 : vector<16x32xf32>
    %105 = arith.addf %1, %104 : vector<16x32xf32>
    %c0_34 = arith.constant 0 : index
    %c0_35 = arith.constant 0 : index
    %106 = vector.load %arg6[%c0_34, %c0_35] : memref<1x32xf32, #tpu.memory_space<vmem>>, vector<1x32xf32>
    %c0_36 = arith.constant 0 : index
    %c0_37 = arith.constant 0 : index
    %107 = vector.load %arg7[%c0_36, %c0_37] : memref<1x32xf32, #tpu.memory_space<vmem>>, vector<1x32xf32>
    %cst_38 = arith.constant dense<0.000000e+00> : vector<16xf32>
    %108 = vector.multi_reduction <add>, %105, %cst_38 [1] : vector<16x32xf32> to vector<16xf32>
    %109 = vector.shape_cast %108 : vector<16xf32> to vector<16x1xf32>
    %cst_39 = arith.constant 3.200000e+01 : f32
    %110 = vector.broadcast %cst_39 : f32 to vector<16x1xf32>
    %111 = arith.divf %109, %110 : vector<16x1xf32>
    %112 = vector.broadcast %111 : vector<16x1xf32> to vector<16x32xf32>
    %113 = arith.subf %105, %112 : vector<16x32xf32>
    %114 = arith.mulf %113, %113 : vector<16x32xf32>
    %cst_40 = arith.constant dense<0.000000e+00> : vector<16xf32>
    %115 = vector.multi_reduction <add>, %114, %cst_40 [1] : vector<16x32xf32> to vector<16xf32>
    %116 = vector.shape_cast %115 : vector<16xf32> to vector<16x1xf32>
    %cst_41 = arith.constant 3.200000e+01 : f32
    %117 = vector.broadcast %cst_41 : f32 to vector<16x1xf32>
    %118 = arith.divf %116, %117 : vector<16x1xf32>
    %119 = vector.broadcast %111 : vector<16x1xf32> to vector<16x32xf32>
    %120 = arith.subf %105, %119 : vector<16x32xf32>
    %cst_42 = arith.constant 9.99999974E-6 : f32
    %121 = vector.broadcast %cst_42 : f32 to vector<16x1xf32>
    %122 = arith.addf %118, %121 : vector<16x1xf32>
    %123 = math.rsqrt %122 : vector<16x1xf32>
    %124 = vector.broadcast %123 : vector<16x1xf32> to vector<16x32xf32>
    %125 = arith.mulf %120, %124 : vector<16x32xf32>
    %126 = vector.broadcast %106 : vector<1x32xf32> to vector<16x32xf32>
    %127 = arith.mulf %125, %126 : vector<16x32xf32>
    %128 = vector.broadcast %107 : vector<1x32xf32> to vector<16x32xf32>
    %129 = arith.addf %127, %128 : vector<16x32xf32>
    %130 = arith.truncf %129 : vector<16x32xf32> to vector<16x32xbf16>
    %c0_43 = arith.constant 0 : index
    %c0_44 = arith.constant 0 : index
    %131 = vector.load %arg8[%c0_43, %c0_44] : memref<32x64xbf16, #tpu.memory_space<vmem>>, vector<32x64xbf16>
    %cst_45 = arith.constant dense<0.000000e+00> : vector<16x64xf32>
    %132 = tpu.matmul %130, %131, %cst_45 {dimension_numbers = #tpu.dot_dimension_numbers<[1], [0], [0], [1], [0, 0, 1, 1], [], []>} : vector<16x32xbf16>, vector<32x64xbf16>, vector<16x64xf32> -> vector<16x64xf32>
    %c0_46 = arith.constant 0 : index
    %c0_47 = arith.constant 0 : index
    %133 = vector.load %arg9[%c0_46, %c0_47] : memref<1x64xf32, #tpu.memory_space<vmem>>, vector<1x64xf32>
    %134 = vector.broadcast %133 : vector<1x64xf32> to vector<16x64xf32>
    %135 = arith.addf %132, %134 : vector<16x64xf32>
    %cst_48 = arith.constant 0.000000e+00 : f32
    %136 = vector.broadcast %cst_48 : f32 to vector<16x64xf32>
    %137 = arith.maximumf %135, %136 : vector<16x64xf32>
    %138 = arith.truncf %137 : vector<16x64xf32> to vector<16x64xbf16>
    %c0_49 = arith.constant 0 : index
    %c0_50 = arith.constant 0 : index
    %139 = vector.load %arg10[%c0_49, %c0_50] : memref<64x32xbf16, #tpu.memory_space<vmem>>, vector<64x32xbf16>
    %cst_51 = arith.constant dense<0.000000e+00> : vector<16x32xf32>
    %140 = tpu.matmul %138, %139, %cst_51 {dimension_numbers = #tpu.dot_dimension_numbers<[1], [0], [0], [1], [0, 0, 1, 1], [], []>} : vector<16x64xbf16>, vector<64x32xbf16>, vector<16x32xf32> -> vector<16x32xf32>
    %c0_52 = arith.constant 0 : index
    %c0_53 = arith.constant 0 : index
    %141 = vector.load %arg11[%c0_52, %c0_53] : memref<1x32xf32, #tpu.memory_space<vmem>>, vector<1x32xf32>
    %142 = vector.broadcast %141 : vector<1x32xf32> to vector<16x32xf32>
    %143 = arith.addf %140, %142 : vector<16x32xf32>
    %144 = arith.addf %129, %143 : vector<16x32xf32>
    %c0_54 = arith.constant 0 : index
    %c0_55 = arith.constant 0 : index
    %145 = vector.load %arg12[%c0_54, %c0_55] : memref<1x32xf32, #tpu.memory_space<vmem>>, vector<1x32xf32>
    %c0_56 = arith.constant 0 : index
    %c0_57 = arith.constant 0 : index
    %146 = vector.load %arg13[%c0_56, %c0_57] : memref<1x32xf32, #tpu.memory_space<vmem>>, vector<1x32xf32>
    %cst_58 = arith.constant dense<0.000000e+00> : vector<16xf32>
    %147 = vector.multi_reduction <add>, %144, %cst_58 [1] : vector<16x32xf32> to vector<16xf32>
    %148 = vector.shape_cast %147 : vector<16xf32> to vector<16x1xf32>
    %cst_59 = arith.constant 3.200000e+01 : f32
    %149 = vector.broadcast %cst_59 : f32 to vector<16x1xf32>
    %150 = arith.divf %148, %149 : vector<16x1xf32>
    %151 = vector.broadcast %150 : vector<16x1xf32> to vector<16x32xf32>
    %152 = arith.subf %144, %151 : vector<16x32xf32>
    %153 = arith.mulf %152, %152 : vector<16x32xf32>
    %cst_60 = arith.constant dense<0.000000e+00> : vector<16xf32>
    %154 = vector.multi_reduction <add>, %153, %cst_60 [1] : vector<16x32xf32> to vector<16xf32>
    %155 = vector.shape_cast %154 : vector<16xf32> to vector<16x1xf32>
    %cst_61 = arith.constant 3.200000e+01 : f32
    %156 = vector.broadcast %cst_61 : f32 to vector<16x1xf32>
    %157 = arith.divf %155, %156 : vector<16x1xf32>
    %158 = vector.broadcast %150 : vector<16x1xf32> to vector<16x32xf32>
    %159 = arith.subf %144, %158 : vector<16x32xf32>
    %cst_62 = arith.constant 9.99999974E-6 : f32
    %160 = vector.broadcast %cst_62 : f32 to vector<16x1xf32>
    %161 = arith.addf %157, %160 : vector<16x1xf32>
    %162 = math.rsqrt %161 : vector<16x1xf32>
    %163 = vector.broadcast %162 : vector<16x1xf32> to vector<16x32xf32>
    %164 = arith.mulf %159, %163 : vector<16x32xf32>
    %165 = vector.broadcast %145 : vector<1x32xf32> to vector<16x32xf32>
    %166 = arith.mulf %164, %165 : vector<16x32xf32>
    %167 = vector.broadcast %146 : vector<1x32xf32> to vector<16x32xf32>
    %168 = arith.addf %166, %167 : vector<16x32xf32>
    %169 = vector.shape_cast %168 : vector<16x32xf32> to vector<2x8x32xf32>
    %c0_63 = arith.constant 0 : index
    %c0_64 = arith.constant 0 : index
    %c0_65 = arith.constant 0 : index
    %170 = vector.load %arg14[%c0_63, %c0_64, %c0_65] : memref<2x8x32xf32, #tpu.memory_space<vmem>>, vector<2x8x32xf32>
    tpu.vector_store %arg14[%c0_63, %c0_64, %c0_65], %169 {strides = array<i32>} : memref<2x8x32xf32, #tpu.memory_space<vmem>>, vector<2x8x32xf32>,
    return
  }
  func.func @transform_0(%arg0: i32) -> (i32, i32, i32) {
    %c0_i32 = arith.constant 0 : i32
    %c0_i32_0 = arith.constant 0 : i32
    %c0_i32_1 = arith.constant 0 : i32
    return %arg0, %c0_i32, %c0_i32_0 : i32, i32, i32
  }
  func.func @transform_1(%arg0: i32) -> (i32, i32) {
    %c0_i32 = arith.constant 0 : i32
    %c0_i32_0 = arith.constant 0 : i32
    %c0_i32_1 = arith.constant 0 : i32
    return %c0_i32, %c0_i32_0 : i32, i32
  }
  func.func @transform_2(%arg0: i32) -> (i32, i32) {
    %c0_i32 = arith.constant 0 : i32
    %c0_i32_0 = arith.constant 0 : i32
    %c0_i32_1 = arith.constant 0 : i32
    return %c0_i32, %c0_i32_0 : i32, i32
  }
  func.func @transform_3(%arg0: i32) -> (i32, i32) {
    %c0_i32 = arith.constant 0 : i32
    %c0_i32_0 = arith.constant 0 : i32
    %c0_i32_1 = arith.constant 0 : i32
    return %c0_i32, %c0_i32_0 : i32, i32
  }
  func.func @transform_4(%arg0: i32) -> (i32, i32) {
    %c0_i32 = arith.constant 0 : i32
    %c0_i32_0 = arith.constant 0 : i32
    %c0_i32_1 = arith.constant 0 : i32
    return %c0_i32, %c0_i32_0 : i32, i32
  }
  func.func @transform_5(%arg0: i32) -> (i32, i32) {
    %c0_i32 = arith.constant 0 : i32
    %c0_i32_0 = arith.constant 0 : i32
    %c0_i32_1 = arith.constant 0 : i32
    return %c0_i32, %c0_i32_0 : i32, i32
  }
  func.func @transform_6(%arg0: i32) -> (i32, i32) {
    %c0_i32 = arith.constant 0 : i32
    %c0_i32_0 = arith.constant 0 : i32
    %c0_i32_1 = arith.constant 0 : i32
    return %c0_i32, %c0_i32_0 : i32, i32
  }
  func.func @transform_7(%arg0: i32) -> (i32, i32) {
    %c0_i32 = arith.constant 0 : i32
    %c0_i32_0 = arith.constant 0 : i32
    %c0_i32_1 = arith.constant 0 : i32
    return %c0_i32, %c0_i32_0 : i32, i32
  }
  func.func @transform_8(%arg0: i32) -> (i32, i32) {
    %c0_i32 = arith.constant 0 : i32
    %c0_i32_0 = arith.constant 0 : i32
    %c0_i32_1 = arith.constant 0 : i32
    return %c0_i32, %c0_i32_0 : i32, i32
  }
  func.func @transform_9(%arg0: i32) -> (i32, i32) {
    %c0_i32 = arith.constant 0 : i32
    %c0_i32_0 = arith.constant 0 : i32
    %c0_i32_1 = arith.constant 0 : i32
    return %c0_i32, %c0_i32_0 : i32, i32
  }
  func.func @transform_10(%arg0: i32) -> (i32, i32) {
    %c0_i32 = arith.constant 0 : i32
    %c0_i32_0 = arith.constant 0 : i32
    %c0_i32_1 = arith.constant 0 : i32
    return %c0_i32, %c0_i32_0 : i32, i32
  }
  func.func @transform_11(%arg0: i32) -> (i32, i32) {
    %c0_i32 = arith.constant 0 : i32
    %c0_i32_0 = arith.constant 0 : i32
    %c0_i32_1 = arith.constant 0 : i32
    return %c0_i32, %c0_i32_0 : i32, i32
  }
  func.func @transform_12(%arg0: i32) -> (i32, i32) {
    %c0_i32 = arith.constant 0 : i32
    %c0_i32_0 = arith.constant 0 : i32
    %c0_i32_1 = arith.constant 0 : i32
    return %c0_i32, %c0_i32_0 : i32, i32
  }
  func.func @transform_13(%arg0: i32) -> (i32, i32, i32) {
    %c0_i32 = arith.constant 0 : i32
    %c0_i32_0 = arith.constant 0 : i32
    %c0_i32_1 = arith.constant 0 : i32
    return %arg0, %c0_i32, %c0_i32_0 : i32, i32, i32
  }
}

module attributes {stable_mosaic.version = 11 : i64} {
  func.func @_transformer_block_kernel(%arg0: i32, %arg1: memref<2x8x32xf32, #tpu.memory_space<vmem>>, %arg2: memref<32x96xbf16, #tpu.memory_space<vmem>>, %arg3: memref<1x96xf32, #tpu.memory_space<vmem>>, %arg4: memref<32x32xbf16, #tpu.memory_space<vmem>>, %arg5: memref<1x32xf32, #tpu.memory_space<vmem>>, %arg6: memref<1x32xf32, #tpu.memory_space<vmem>>, %arg7: memref<1x32xf32, #tpu.memory_space<vmem>>, %arg8: memref<32x64xbf16, #tpu.memory_space<vmem>>, %arg9: memref<1x64xf32, #tpu.memory_space<vmem>>, %arg10: memref<64x32xbf16, #tpu.memory_space<vmem>>, %arg11: memref<1x32xf32, #tpu.memory_space<vmem>>, %arg12: memref<1x32xf32, #tpu.memory_space<vmem>>, %arg13: memref<1x32xf32, #tpu.memory_space<vmem>>, %arg14: memref<2x8x32xf32, #tpu.memory_space<vmem>>, %arg15: memref<16x32xf32, #tpu.memory_space<vmem>>) attributes {dimension_semantics = [#tpu.dimension_semantics<parallel>], iteration_bounds = array<i64: 1>, scalar_prefetch = 0 : i64, scratch_operands = 1 : i64, tpu.core_type = #tpu.core_type<tc>, window_params = [{transform_indices = @transform_0, window_bounds = array<i64: 2, 8, 32>}, {pipeline_mode = #tpu.pipeline_mode<synchronous>, transform_indices = @transform_1, window_bounds = array<i64: 32, 96>}, {pipeline_mode = #tpu.pipeline_mode<synchronous>, transform_indices = @transform_2, window_bounds = array<i64: 1, 96>}, {pipeline_mode = #tpu.pipeline_mode<synchronous>, transform_indices = @transform_3, window_bounds = array<i64: 32, 32>}, {pipeline_mode = #tpu.pipeline_mode<synchronous>, transform_indices = @transform_4, window_bounds = array<i64: 1, 32>}, {pipeline_mode = #tpu.pipeline_mode<synchronous>, transform_indices = @transform_5, window_bounds = array<i64: 1, 32>}, {pipeline_mode = #tpu.pipeline_mode<synchronous>, transform_indices = @transform_6, window_bounds = array<i64: 1, 32>}, {pipeline_mode = #tpu.pipeline_mode<synchronous>, transform_indices = @transform_7, window_bounds = array<i64: 32, 64>}, {pipeline_mode = #tpu.pipeline_mode<synchronous>, transform_indices = @transform_8, window_bounds = array<i64: 1, 64>}, {pipeline_mode = #tpu.pipeline_mode<synchronous>, transform_indices = @transform_9, window_bounds = array<i64: 64, 32>}, {pipeline_mode = #tpu.pipeline_mode<synchronous>, transform_indices = @transform_10, window_bounds = array<i64: 1, 32>}, {pipeline_mode = #tpu.pipeline_mode<synchronous>, transform_indices = @transform_11, window_bounds = array<i64: 1, 32>}, {pipeline_mode = #tpu.pipeline_mode<synchronous>, transform_indices = @transform_12, window_bounds = array<i64: 1, 32>}, {transform_indices = @transform_13, window_bounds = array<i64: 2, 8, 32>}]} {
    %c0 = arith.constant 0 : index
    %c0_0 = arith.constant 0 : index
    %c0_1 = arith.constant 0 : index
    %0 = vector.load %arg1[%c0, %c0_0, %c0_1] : memref<2x8x32xf32, #tpu.memory_space<vmem>>, vector<2x8x32xf32>
    %1 = vector.shape_cast %0 : vector<2x8x32xf32> to vector<16x32xf32>
    %2 = arith.truncf %1 : vector<16x32xf32> to vector<16x32xbf16>
    %c0_2 = arith.constant 0 : index
    %c0_3 = arith.constant 0 : index
    %3 = vector.load %arg2[%c0_2, %c0_3] : memref<32x96xbf16, #tpu.memory_space<vmem>>, vector<32x96xbf16>
    %cst = arith.constant dense<0.000000e+00> : vector<16x96xf32>
    %4 = tpu.matmul %2, %3, %cst {dimension_numbers = #tpu.dot_dimension_numbers<[1], [0], [0], [1], [0, 0, 1, 1], [], []>} : vector<16x32xbf16>, vector<32x96xbf16>, vector<16x96xf32> -> vector<16x96xf32>
    %c0_4 = arith.constant 0 : index
    %c0_5 = arith.constant 0 : index
    %5 = vector.load %arg3[%c0_4, %c0_5] : memref<1x96xf32, #tpu.memory_space<vmem>>, vector<1x96xf32>
    %6 = vector.broadcast %5 : vector<1x96xf32> to vector<16x96xf32>
    %7 = arith.addf %4, %6 : vector<16x96xf32>
    %8 = vector.extract_strided_slice %7 {offsets = [0, 0], sizes = [16, 32], strides = [1, 1]} : vector<16x96xf32> to vector<16x32xf32>
    %9 = arith.truncf %8 : vector<16x32xf32> to vector<16x32xbf16>
    %10 = vector.extract_strided_slice %7 {offsets = [0, 32], sizes = [16, 32], strides = [1, 1]} : vector<16x96xf32> to vector<16x32xf32>
    %11 = arith.truncf %10 : vector<16x32xf32> to vector<16x32xbf16>
    %12 = vector.extract_strided_slice %7 {offsets = [0, 64], sizes = [16, 32], strides = [1, 1]} : vector<16x96xf32> to vector<16x32xf32>
    %13 = arith.truncf %12 : vector<16x32xf32> to vector<16x32xbf16>
    %14 = vector.extract_strided_slice %9 {offsets = [0, 0], sizes = [16, 8], strides = [1, 1]} : vector<16x32xbf16> to vector<16x8xbf16>
    %15 = vector.shape_cast %14 : vector<16x8xbf16> to vector<2x8x8xbf16>
    %16 = vector.extract_strided_slice %11 {offsets = [0, 0], sizes = [16, 8], strides = [1, 1]} : vector<16x32xbf16> to vector<16x8xbf16>
    %17 = vector.shape_cast %16 : vector<16x8xbf16> to vector<2x8x8xbf16>
    %18 = vector.extract_strided_slice %13 {offsets = [0, 0], sizes = [16, 8], strides = [1, 1]} : vector<16x32xbf16> to vector<16x8xbf16>
    %19 = vector.shape_cast %18 : vector<16x8xbf16> to vector<2x8x8xbf16>
    "tpu.trace_start"() <{level = 10 : i32, message = "bqd,bkd->bqk"}> : () -> ()
    %cst_6 = arith.constant dense<0.000000e+00> : vector<2x8x8xf32>
    %20 = tpu.matmul %15, %17, %cst_6 {dimension_numbers = #tpu.dot_dimension_numbers<[2], [2], [1], [1], [0, 0, 0, 1, 1, 1], [0], [0]>} : vector<2x8x8xbf16>, vector<2x8x8xbf16>, vector<2x8x8xf32> -> vector<2x8x8xf32>
    "tpu.trace_stop"() : () -> ()
    %cst_7 = arith.constant dense<0xFF800000> : vector<2x8xf32>
    %21 = vector.multi_reduction <maximumf>, %20, %cst_7 [2] : vector<2x8x8xf32> to vector<2x8xf32>
    %22 = vector.shape_cast %21 : vector<2x8xf32> to vector<2x8x1xf32>
    %23 = vector.broadcast %22 : vector<2x8x1xf32> to vector<2x8x8xf32>
    %24 = arith.subf %20, %23 : vector<2x8x8xf32>
    %25 = math.exp %24 : vector<2x8x8xf32>
    %cst_8 = arith.constant dense<0.000000e+00> : vector<2x8xf32>
    %26 = vector.multi_reduction <add>, %25, %cst_8 [2] : vector<2x8x8xf32> to vector<2x8xf32>
    %27 = vector.shape_cast %26 : vector<2x8xf32> to vector<2x8x1xf32>
    %28 = tpu.reciprocal %27 {approx = true} : vector<2x8x1xf32> -> vector<2x8x1xf32>
    %29 = vector.broadcast %28 : vector<2x8x1xf32> to vector<2x8x8xf32>
    %30 = arith.mulf %25, %29 : vector<2x8x8xf32>
    %31 = arith.truncf %30 : vector<2x8x8xf32> to vector<2x8x8xbf16>
    "tpu.trace_start"() <{level = 10 : i32, message = "bqk,bkd->bqd"}> : () -> ()
    %cst_9 = arith.constant dense<0.000000e+00> : vector<2x8x8xf32>
    %32 = tpu.matmul %31, %19, %cst_9 {dimension_numbers = #tpu.dot_dimension_numbers<[2], [1], [1], [2], [0, 0, 0, 1, 1, 2], [0], [0]>} : vector<2x8x8xbf16>, vector<2x8x8xbf16>, vector<2x8x8xf32> -> vector<2x8x8xf32>
    "tpu.trace_stop"() : () -> ()
    %33 = vector.shape_cast %32 : vector<2x8x8xf32> to vector<16x8xf32>
    %c0_10 = arith.constant 0 : index
    %c0_11 = arith.constant 0 : index
    %34 = vector.load %arg15[%c0_10, %c0_11] : memref<16x32xf32, #tpu.memory_space<vmem>>, vector<16x8xf32>
    tpu.vector_store %arg15[%c0_10, %c0_11], %33 {strides = array<i32>} : memref<16x32xf32, #tpu.memory_space<vmem>>, vector<16x8xf32>,
    %35 = vector.extract_strided_slice %9 {offsets = [0, 8], sizes = [16, 8], strides = [1, 1]} : vector<16x32xbf16> to vector<16x8xbf16>
    %36 = vector.shape_cast %35 : vector<16x8xbf16> to vector<2x8x8xbf16>
    %37 = vector.extract_strided_slice %11 {offsets = [0, 8], sizes = [16, 8], strides = [1, 1]} : vector<16x32xbf16> to vector<16x8xbf16>
    %38 = vector.shape_cast %37 : vector<16x8xbf16> to vector<2x8x8xbf16>
    %39 = vector.extract_strided_slice %13 {offsets = [0, 8], sizes = [16, 8], strides = [1, 1]} : vector<16x32xbf16> to vector<16x8xbf16>
    %40 = vector.shape_cast %39 : vector<16x8xbf16> to vector<2x8x8xbf16>
    "tpu.trace_start"() <{level = 10 : i32, message = "bqd,bkd->bqk"}> : () -> ()
    %cst_12 = arith.constant dense<0.000000e+00> : vector<2x8x8xf32>
    %41 = tpu.matmul %36, %38, %cst_12 {dimension_numbers = #tpu.dot_dimension_numbers<[2], [2], [1], [1], [0, 0, 0, 1, 1, 1], [0], [0]>} : vector<2x8x8xbf16>, vector<2x8x8xbf16>, vector<2x8x8xf32> -> vector<2x8x8xf32>
    "tpu.trace_stop"() : () -> ()
    %cst_13 = arith.constant dense<0xFF800000> : vector<2x8xf32>
    %42 = vector.multi_reduction <maximumf>, %41, %cst_13 [2] : vector<2x8x8xf32> to vector<2x8xf32>
    %43 = vector.shape_cast %42 : vector<2x8xf32> to vector<2x8x1xf32>
    %44 = vector.broadcast %43 : vector<2x8x1xf32> to vector<2x8x8xf32>
    %45 = arith.subf %41, %44 : vector<2x8x8xf32>
    %46 = math.exp %45 : vector<2x8x8xf32>
    %cst_14 = arith.constant dense<0.000000e+00> : vector<2x8xf32>
    %47 = vector.multi_reduction <add>, %46, %cst_14 [2] : vector<2x8x8xf32> to vector<2x8xf32>
    %48 = vector.shape_cast %47 : vector<2x8xf32> to vector<2x8x1xf32>
    %49 = tpu.reciprocal %48 {approx = true} : vector<2x8x1xf32> -> vector<2x8x1xf32>
    %50 = vector.broadcast %49 : vector<2x8x1xf32> to vector<2x8x8xf32>
    %51 = arith.mulf %46, %50 : vector<2x8x8xf32>
    %52 = arith.truncf %51 : vector<2x8x8xf32> to vector<2x8x8xbf16>
    "tpu.trace_start"() <{level = 10 : i32, message = "bqk,bkd->bqd"}> : () -> ()
    %cst_15 = arith.constant dense<0.000000e+00> : vector<2x8x8xf32>
    %53 = tpu.matmul %52, %40, %cst_15 {dimension_numbers = #tpu.dot_dimension_numbers<[2], [1], [1], [2], [0, 0, 0, 1, 1, 2], [0], [0]>} : vector<2x8x8xbf16>, vector<2x8x8xbf16>, vector<2x8x8xf32> -> vector<2x8x8xf32>
    "tpu.trace_stop"() : () -> ()
    %54 = vector.shape_cast %53 : vector<2x8x8xf32> to vector<16x8xf32>
    %c0_16 = arith.constant 0 : index
    %c8 = arith.constant 8 : index
    %55 = vector.load %arg15[%c0_16, %c8] : memref<16x32xf32, #tpu.memory_space<vmem>>, vector<16x8xf32>
    tpu.vector_store %arg15[%c0_16, %c8], %54 {strides = array<i32>} : memref<16x32xf32, #tpu.memory_space<vmem>>, vector<16x8xf32>,
    %56 = vector.extract_strided_slice %9 {offsets = [0, 16], sizes = [16, 8], strides = [1, 1]} : vector<16x32xbf16> to vector<16x8xbf16>
    %57 = vector.shape_cast %56 : vector<16x8xbf16> to vector<2x8x8xbf16>
    %58 = vector.extract_strided_slice %11 {offsets = [0, 16], sizes = [16, 8], strides = [1, 1]} : vector<16x32xbf16> to vector<16x8xbf16>
    %59 = vector.shape_cast %58 : vector<16x8xbf16> to vector<2x8x8xbf16>
    %60 = vector.extract_strided_slice %13 {offsets = [0, 16], sizes = [16, 8], strides = [1, 1]} : vector<16x32xbf16> to vector<16x8xbf16>
    %61 = vector.shape_cast %60 : vector<16x8xbf16> to vector<2x8x8xbf16>
    "tpu.trace_start"() <{level = 10 : i32, message = "bqd,bkd->bqk"}> : () -> ()
    %cst_17 = arith.constant dense<0.000000e+00> : vector<2x8x8xf32>
    %62 = tpu.matmul %57, %59, %cst_17 {dimension_numbers = #tpu.dot_dimension_numbers<[2], [2], [1], [1], [0, 0, 0, 1, 1, 1], [0], [0]>} : vector<2x8x8xbf16>, vector<2x8x8xbf16>, vector<2x8x8xf32> -> vector<2x8x8xf32>
    "tpu.trace_stop"() : () -> ()
    %cst_18 = arith.constant dense<0xFF800000> : vector<2x8xf32>
    %63 = vector.multi_reduction <maximumf>, %62, %cst_18 [2] : vector<2x8x8xf32> to vector<2x8xf32>
    %64 = vector.shape_cast %63 : vector<2x8xf32> to vector<2x8x1xf32>
    %65 = vector.broadcast %64 : vector<2x8x1xf32> to vector<2x8x8xf32>
    %66 = arith.subf %62, %65 : vector<2x8x8xf32>
    %67 = math.exp %66 : vector<2x8x8xf32>
    %cst_19 = arith.constant dense<0.000000e+00> : vector<2x8xf32>
    %68 = vector.multi_reduction <add>, %67, %cst_19 [2] : vector<2x8x8xf32> to vector<2x8xf32>
    %69 = vector.shape_cast %68 : vector<2x8xf32> to vector<2x8x1xf32>
    %70 = tpu.reciprocal %69 {approx = true} : vector<2x8x1xf32> -> vector<2x8x1xf32>
    %71 = vector.broadcast %70 : vector<2x8x1xf32> to vector<2x8x8xf32>
    %72 = arith.mulf %67, %71 : vector<2x8x8xf32>
    %73 = arith.truncf %72 : vector<2x8x8xf32> to vector<2x8x8xbf16>
    "tpu.trace_start"() <{level = 10 : i32, message = "bqk,bkd->bqd"}> : () -> ()
    %cst_20 = arith.constant dense<0.000000e+00> : vector<2x8x8xf32>
    %74 = tpu.matmul %73, %61, %cst_20 {dimension_numbers = #tpu.dot_dimension_numbers<[2], [1], [1], [2], [0, 0, 0, 1, 1, 2], [0], [0]>} : vector<2x8x8xbf16>, vector<2x8x8xbf16>, vector<2x8x8xf32> -> vector<2x8x8xf32>
    "tpu.trace_stop"() : () -> ()
    %75 = vector.shape_cast %74 : vector<2x8x8xf32> to vector<16x8xf32>
    %c0_21 = arith.constant 0 : index
    %c16 = arith.constant 16 : index
    %76 = vector.load %arg15[%c0_21, %c16] : memref<16x32xf32, #tpu.memory_space<vmem>>, vector<16x8xf32>
    tpu.vector_store %arg15[%c0_21, %c16], %75 {strides = array<i32>} : memref<16x32xf32, #tpu.memory_space<vmem>>, vector<16x8xf32>,
    %77 = vector.extract_strided_slice %9 {offsets = [0, 24], sizes = [16, 8], strides = [1, 1]} : vector<16x32xbf16> to vector<16x8xbf16>
    %78 = vector.shape_cast %77 : vector<16x8xbf16> to vector<2x8x8xbf16>
    %79 = vector.extract_strided_slice %11 {offsets = [0, 24], sizes = [16, 8], strides = [1, 1]} : vector<16x32xbf16> to vector<16x8xbf16>
    %80 = vector.shape_cast %79 : vector<16x8xbf16> to vector<2x8x8xbf16>
    %81 = vector.extract_strided_slice %13 {offsets = [0, 24], sizes = [16, 8], strides = [1, 1]} : vector<16x32xbf16> to vector<16x8xbf16>
    %82 = vector.shape_cast %81 : vector<16x8xbf16> to vector<2x8x8xbf16>
    "tpu.trace_start"() <{level = 10 : i32, message = "bqd,bkd->bqk"}> : () -> ()
    %cst_22 = arith.constant dense<0.000000e+00> : vector<2x8x8xf32>
    %83 = tpu.matmul %78, %80, %cst_22 {dimension_numbers = #tpu.dot_dimension_numbers<[2], [2], [1], [1], [0, 0, 0, 1, 1, 1], [0], [0]>} : vector<2x8x8xbf16>, vector<2x8x8xbf16>, vector<2x8x8xf32> -> vector<2x8x8xf32>
    "tpu.trace_stop"() : () -> ()
    %cst_23 = arith.constant dense<0xFF800000> : vector<2x8xf32>
    %84 = vector.multi_reduction <maximumf>, %83, %cst_23 [2] : vector<2x8x8xf32> to vector<2x8xf32>
    %85 = vector.shape_cast %84 : vector<2x8xf32> to vector<2x8x1xf32>
    %86 = vector.broadcast %85 : vector<2x8x1xf32> to vector<2x8x8xf32>
    %87 = arith.subf %83, %86 : vector<2x8x8xf32>
    %88 = math.exp %87 : vector<2x8x8xf32>
    %cst_24 = arith.constant dense<0.000000e+00> : vector<2x8xf32>
    %89 = vector.multi_reduction <add>, %88, %cst_24 [2] : vector<2x8x8xf32> to vector<2x8xf32>
    %90 = vector.shape_cast %89 : vector<2x8xf32> to vector<2x8x1xf32>
    %91 = tpu.reciprocal %90 {approx = true} : vector<2x8x1xf32> -> vector<2x8x1xf32>
    %92 = vector.broadcast %91 : vector<2x8x1xf32> to vector<2x8x8xf32>
    %93 = arith.mulf %88, %92 : vector<2x8x8xf32>
    %94 = arith.truncf %93 : vector<2x8x8xf32> to vector<2x8x8xbf16>
    "tpu.trace_start"() <{level = 10 : i32, message = "bqk,bkd->bqd"}> : () -> ()
    %cst_25 = arith.constant dense<0.000000e+00> : vector<2x8x8xf32>
    %95 = tpu.matmul %94, %82, %cst_25 {dimension_numbers = #tpu.dot_dimension_numbers<[2], [1], [1], [2], [0, 0, 0, 1, 1, 2], [0], [0]>} : vector<2x8x8xbf16>, vector<2x8x8xbf16>, vector<2x8x8xf32> -> vector<2x8x8xf32>
    "tpu.trace_stop"() : () -> ()
    %96 = vector.shape_cast %95 : vector<2x8x8xf32> to vector<16x8xf32>
    %c0_26 = arith.constant 0 : index
    %c24 = arith.constant 24 : index
    %97 = vector.load %arg15[%c0_26, %c24] : memref<16x32xf32, #tpu.memory_space<vmem>>, vector<16x8xf32>
    tpu.vector_store %arg15[%c0_26, %c24], %96 {strides = array<i32>} : memref<16x32xf32, #tpu.memory_space<vmem>>, vector<16x8xf32>,
    %c0_27 = arith.constant 0 : index
    %c0_28 = arith.constant 0 : index
    %98 = vector.load %arg15[%c0_27, %c0_28] : memref<16x32xf32, #tpu.memory_space<vmem>>, vector<16x32xf32>
    %99 = arith.truncf %98 : vector<16x32xf32> to vector<16x32xbf16>
    %c0_29 = arith.constant 0 : index
    %c0_30 = arith.constant 0 : index
    %100 = vector.load %arg4[%c0_29, %c0_30] : memref<32x32xbf16, #tpu.memory_space<vmem>>, vector<32x32xbf16>
    %cst_31 = arith.constant dense<0.000000e+00> : vector<16x32xf32>
    %101 = tpu.matmul %99, %100, %cst_31 {dimension_numbers = #tpu.dot_dimension_numbers<[1], [0], [0], [1], [0, 0, 1, 1], [], []>} : vector<16x32xbf16>, vector<32x32xbf16>, vector<16x32xf32> -> vector<16x32xf32>
    %c0_32 = arith.constant 0 : index
    %c0_33 = arith.constant 0 : index
    %102 = vector.load %arg5[%c0_32, %c0_33] : memref<1x32xf32, #tpu.memory_space<vmem>>, vector<1x32xf32>
    %103 = vector.broadcast %102 : vector<1x32xf32> to vector<16x32xf32>
    %104 = arith.addf %101, %103 : vector<16x32xf32>
    %105 = arith.addf %1, %104 : vector<16x32xf32>
    %c0_34 = arith.constant 0 : index
    %c0_35 = arith.constant 0 : index
    %106 = vector.load %arg6[%c0_34, %c0_35] : memref<1x32xf32, #tpu.memory_space<vmem>>, vector<1x32xf32>
    %c0_36 = arith.constant 0 : index
    %c0_37 = arith.constant 0 : index
    %107 = vector.load %arg7[%c0_36, %c0_37] : memref<1x32xf32, #tpu.memory_space<vmem>>, vector<1x32xf32>
    %cst_38 = arith.constant dense<0.000000e+00> : vector<16xf32>
    %108 = vector.multi_reduction <add>, %105, %cst_38 [1] : vector<16x32xf32> to vector<16xf32>
    %109 = vector.shape_cast %108 : vector<16xf32> to vector<16x1xf32>
    %cst_39 = arith.constant 3.200000e+01 : f32
    %110 = vector.broadcast %cst_39 : f32 to vector<16x1xf32>
    %111 = arith.divf %109, %110 : vector<16x1xf32>
    %112 = vector.broadcast %111 : vector<16x1xf32> to vector<16x32xf32>
    %113 = arith.subf %105, %112 : vector<16x32xf32>
    %114 = arith.mulf %113, %113 : vector<16x32xf32>
    %cst_40 = arith.constant dense<0.000000e+00> : vector<16xf32>
    %115 = vector.multi_reduction <add>, %114, %cst_40 [1] : vector<16x32xf32> to vector<16xf32>
    %116 = vector.shape_cast %115 : vector<16xf32> to vector<16x1xf32>
    %cst_41 = arith.constant 3.200000e+01 : f32
    %117 = vector.broadcast %cst_41 : f32 to vector<16x1xf32>
    %118 = arith.divf %116, %117 : vector<16x1xf32>
    %119 = vector.broadcast %111 : vector<16x1xf32> to vector<16x32xf32>
    %120 = arith.subf %105, %119 : vector<16x32xf32>
    %cst_42 = arith.constant 9.99999974E-6 : f32
    %121 = vector.broadcast %cst_42 : f32 to vector<16x1xf32>
    %122 = arith.addf %118, %121 : vector<16x1xf32>
    %123 = math.rsqrt %122 : vector<16x1xf32>
    %124 = vector.broadcast %123 : vector<16x1xf32> to vector<16x32xf32>
    %125 = arith.mulf %120, %124 : vector<16x32xf32>
    %126 = vector.broadcast %106 : vector<1x32xf32> to vector<16x32xf32>
    %127 = arith.mulf %125, %126 : vector<16x32xf32>
    %128 = vector.broadcast %107 : vector<1x32xf32> to vector<16x32xf32>
    %129 = arith.addf %127, %128 : vector<16x32xf32>
    %130 = arith.truncf %129 : vector<16x32xf32> to vector<16x32xbf16>
    %c0_43 = arith.constant 0 : index
    %c0_44 = arith.constant 0 : index
    %131 = vector.load %arg8[%c0_43, %c0_44] : memref<32x64xbf16, #tpu.memory_space<vmem>>, vector<32x64xbf16>
    %cst_45 = arith.constant dense<0.000000e+00> : vector<16x64xf32>
    %132 = tpu.matmul %130, %131, %cst_45 {dimension_numbers = #tpu.dot_dimension_numbers<[1], [0], [0], [1], [0, 0, 1, 1], [], []>} : vector<16x32xbf16>, vector<32x64xbf16>, vector<16x64xf32> -> vector<16x64xf32>
    %c0_46 = arith.constant 0 : index
    %c0_47 = arith.constant 0 : index
    %133 = vector.load %arg9[%c0_46, %c0_47] : memref<1x64xf32, #tpu.memory_space<vmem>>, vector<1x64xf32>
    %134 = vector.broadcast %133 : vector<1x64xf32> to vector<16x64xf32>
    %135 = arith.addf %132, %134 : vector<16x64xf32>
    %cst_48 = arith.constant 0.000000e+00 : f32
    %136 = vector.broadcast %cst_48 : f32 to vector<16x64xf32>
    %137 = arith.maximumf %135, %136 : vector<16x64xf32>
    %138 = arith.truncf %137 : vector<16x64xf32> to vector<16x64xbf16>
    %c0_49 = arith.constant 0 : index
    %c0_50 = arith.constant 0 : index
    %139 = vector.load %arg10[%c0_49, %c0_50] : memref<64x32xbf16, #tpu.memory_space<vmem>>, vector<64x32xbf16>
    %cst_51 = arith.constant dense<0.000000e+00> : vector<16x32xf32>
    %140 = tpu.matmul %138, %139, %cst_51 {dimension_numbers = #tpu.dot_dimension_numbers<[1], [0], [0], [1], [0, 0, 1, 1], [], []>} : vector<16x64xbf16>, vector<64x32xbf16>, vector<16x32xf32> -> vector<16x32xf32>
    %c0_52 = arith.constant 0 : index
    %c0_53 = arith.constant 0 : index
    %141 = vector.load %arg11[%c0_52, %c0_53] : memref<1x32xf32, #tpu.memory_space<vmem>>, vector<1x32xf32>
    %142 = vector.broadcast %141 : vector<1x32xf32> to vector<16x32xf32>
    %143 = arith.addf %140, %142 : vector<16x32xf32>
    %144 = arith.addf %129, %143 : vector<16x32xf32>
    %c0_54 = arith.constant 0 : index
    %c0_55 = arith.constant 0 : index
    %145 = vector.load %arg12[%c0_54, %c0_55] : memref<1x32xf32, #tpu.memory_space<vmem>>, vector<1x32xf32>
    %c0_56 = arith.constant 0 : index
    %c0_57 = arith.constant 0 : index
    %146 = vector.load %arg13[%c0_56, %c0_57] : memref<1x32xf32, #tpu.memory_space<vmem>>, vector<1x32xf32>
    %cst_58 = arith.constant dense<0.000000e+00> : vector<16xf32>
    %147 = vector.multi_reduction <add>, %144, %cst_58 [1] : vector<16x32xf32> to vector<16xf32>
    %148 = vector.shape_cast %147 : vector<16xf32> to vector<16x1xf32>
    %cst_59 = arith.constant 3.200000e+01 : f32
    %149 = vector.broadcast %cst_59 : f32 to vector<16x1xf32>
    %150 = arith.divf %148, %149 : vector<16x1xf32>
    %151 = vector.broadcast %150 : vector<16x1xf32> to vector<16x32xf32>
    %152 = arith.subf %144, %151 : vector<16x32xf32>
    %153 = arith.mulf %152, %152 : vector<16x32xf32>
    %cst_60 = arith.constant dense<0.000000e+00> : vector<16xf32>
    %154 = vector.multi_reduction <add>, %153, %cst_60 [1] : vector<16x32xf32> to vector<16xf32>
    %155 = vector.shape_cast %154 : vector<16xf32> to vector<16x1xf32>
    %cst_61 = arith.constant 3.200000e+01 : f32
    %156 = vector.broadcast %cst_61 : f32 to vector<16x1xf32>
    %157 = arith.divf %155, %156 : vector<16x1xf32>
    %158 = vector.broadcast %150 : vector<16x1xf32> to vector<16x32xf32>
    %159 = arith.subf %144, %158 : vector<16x32xf32>
    %cst_62 = arith.constant 9.99999974E-6 : f32
    %160 = vector.broadcast %cst_62 : f32 to vector<16x1xf32>
    %161 = arith.addf %157, %160 : vector<16x1xf32>
    %162 = math.rsqrt %161 : vector<16x1xf32>
    %163 = vector.broadcast %162 : vector<16x1xf32> to vector<16x32xf32>
    %164 = arith.mulf %159, %163 : vector<16x32xf32>
    %165 = vector.broadcast %145 : vector<1x32xf32> to vector<16x32xf32>
    %166 = arith.mulf %164, %165 : vector<16x32xf32>
    %167 = vector.broadcast %146 : vector<1x32xf32> to vector<16x32xf32>
    %168 = arith.addf %166, %167 : vector<16x32xf32>
    %169 = vector.shape_cast %168 : vector<16x32xf32> to vector<2x8x32xf32>
    %c0_63 = arith.constant 0 : index
    %c0_64 = arith.constant 0 : index
    %c0_65 = arith.constant 0 : index
    %170 = vector.load %arg14[%c0_63, %c0_64, %c0_65] : memref<2x8x32xf32, #tpu.memory_space<vmem>>, vector<2x8x32xf32>
    tpu.vector_store %arg14[%c0_63, %c0_64, %c0_65], %169 {strides = array<i32>} : memref<2x8x32xf32, #tpu.memory_space<vmem>>, vector<2x8x32xf32>,
    return
  }
  func.func @transform_0(%arg0: i32) -> (i32, i32, i32) {
    %c0_i32 = arith.constant 0 : i32
    %c0_i32_0 = arith.constant 0 : i32
    %c0_i32_1 = arith.constant 0 : i32
    return %arg0, %c0_i32, %c0_i32_0 : i32, i32, i32
  }
  func.func @transform_1(%arg0: i32) -> (i32, i32) {
    %c0_i32 = arith.constant 0 : i32
    %c0_i32_0 = arith.constant 0 : i32
    %c0_i32_1 = arith.constant 0 : i32
    return %c0_i32, %c0_i32_0 : i32, i32
  }
  func.func @transform_2(%arg0: i32) -> (i32, i32) {
    %c0_i32 = arith.constant 0 : i32
    %c0_i32_0 = arith.constant 0 : i32
    %c0_i32_1 = arith.constant 0 : i32
    return %c0_i32, %c0_i32_0 : i32, i32
  }
  func.func @transform_3(%arg0: i32) -> (i32, i32) {
    %c0_i32 = arith.constant 0 : i32
    %c0_i32_0 = arith.constant 0 : i32
    %c0_i32_1 = arith.constant 0 : i32
    return %c0_i32, %c0_i32_0 : i32, i32
  }
  func.func @transform_4(%arg0: i32) -> (i32, i32) {
    %c0_i32 = arith.constant 0 : i32
    %c0_i32_0 = arith.constant 0 : i32
    %c0_i32_1 = arith.constant 0 : i32
    return %c0_i32, %c0_i32_0 : i32, i32
  }
  func.func @transform_5(%arg0: i32) -> (i32, i32) {
    %c0_i32 = arith.constant 0 : i32
    %c0_i32_0 = arith.constant 0 : i32
    %c0_i32_1 = arith.constant 0 : i32
    return %c0_i32, %c0_i32_0 : i32, i32
  }
  func.func @transform_6(%arg0: i32) -> (i32, i32) {
    %c0_i32 = arith.constant 0 : i32
    %c0_i32_0 = arith.constant 0 : i32
    %c0_i32_1 = arith.constant 0 : i32
    return %c0_i32, %c0_i32_0 : i32, i32
  }
  func.func @transform_7(%arg0: i32) -> (i32, i32) {
    %c0_i32 = arith.constant 0 : i32
    %c0_i32_0 = arith.constant 0 : i32
    %c0_i32_1 = arith.constant 0 : i32
    return %c0_i32, %c0_i32_0 : i32, i32
  }
  func.func @transform_8(%arg0: i32) -> (i32, i32) {
    %c0_i32 = arith.constant 0 : i32
    %c0_i32_0 = arith.constant 0 : i32
    %c0_i32_1 = arith.constant 0 : i32
    return %c0_i32, %c0_i32_0 : i32, i32
  }
  func.func @transform_9(%arg0: i32) -> (i32, i32) {
    %c0_i32 = arith.constant 0 : i32
    %c0_i32_0 = arith.constant 0 : i32
    %c0_i32_1 = arith.constant 0 : i32
    return %c0_i32, %c0_i32_0 : i32, i32
  }
  func.func @transform_10(%arg0: i32) -> (i32, i32) {
    %c0_i32 = arith.constant 0 : i32
    %c0_i32_0 = arith.constant 0 : i32
    %c0_i32_1 = arith.constant 0 : i32
    return %c0_i32, %c0_i32_0 : i32, i32
  }
  func.func @transform_11(%arg0: i32) -> (i32, i32) {
    %c0_i32 = arith.constant 0 : i32
    %c0_i32_0 = arith.constant 0 : i32
    %c0_i32_1 = arith.constant 0 : i32
    return %c0_i32, %c0_i32_0 : i32, i32
  }
  func.func @transform_12(%arg0: i32) -> (i32, i32) {
    %c0_i32 = arith.constant 0 : i32
    %c0_i32_0 = arith.constant 0 : i32
    %c0_i32_1 = arith.constant 0 : i32
    return %c0_i32, %c0_i32_0 : i32, i32
  }
  func.func @transform_13(%arg0: i32) -> (i32, i32, i32) {
    %c0_i32 = arith.constant 0 : i32
    %c0_i32_0 = arith.constant 0 : i32
    %c0_i32_1 = arith.constant 0 : i32
    return %arg0, %c0_i32, %c0_i32_0 : i32, i32, i32
  }
}

</mosaic_0001>

<llo_original>
// kernel: tpu_custom_call.1
$region0: #{tpu_custom_call.1}
  #allocation0 [shape = 'u32[]', space=smem, size = 0x4, offset = 0x4, fixed_abs, tag = 'smem constant byte address 0x4 - core index']
  #allocation1 [shape = 'u32[72,128]{1,0:T(1,128)}', space=vmem, size = 0x9000, scoped, tag = 'internal scratch']
  #allocation2 [shape = 'f32[16,32]{1,0:T(8,128)}', space=vmem, size = 0x2000, scoped, tag = 'scratch operand']
  %s0 = inlined_call_operand.vmem [shape: f32[2,8,32], index: 0, kind: input, shape index: {}]
  %s1 = inlined_call_operand.vmem [shape: bf16[32,96], index: 1, kind: input, shape index: {}]
  %s2 = inlined_call_operand.vmem [shape: f32[1,96], index: 2, kind: input, shape index: {}]
  %s3 = inlined_call_operand.vmem [shape: bf16[32,32], index: 3, kind: input, shape index: {}]
  %s4 = inlined_call_operand.vmem [shape: f32[1,32], index: 4, kind: input, shape index: {}]
  %s5 = inlined_call_operand.vmem [shape: f32[1,32], index: 5, kind: input, shape index: {}]
  %s6 = inlined_call_operand.vmem [shape: f32[1,32], index: 6, kind: input, shape index: {}]
  %s7 = inlined_call_operand.hbm [shape: bf16[32,64], index: 7, kind: input, shape index: {}]
  %s8 = inlined_call_operand.vmem [shape: f32[1,64], index: 8, kind: input, shape index: {}]
  %s9 = inlined_call_operand.vmem [shape: bf16[64,32], index: 9, kind: input, shape index: {}]
  %s10 = inlined_call_operand.vmem [shape: f32[1,32], index: 10, kind: input, shape index: {}]
  %s11 = inlined_call_operand.vmem [shape: f32[1,32], index: 11, kind: input, shape index: {}]
  %s12 = inlined_call_operand.vmem [shape: f32[1,32], index: 12, kind: input, shape index: {}]
  %s13 = inlined_call_operand.hbm [shape: f32[2,8,32], index: 13, kind: output, shape index: {}]
  %s14 = sld [smem:[#allocation0]]
  $region66: #{tpu_custom_call.1} parent=0
    _
  %s16 = ssub.s32 1, %s14
  %s17 = scalar_select 0, %s16, %s14
  $region1: #{tpu_custom_call.1} parent=0
    #allocation3 [shape = 'u8[8192]{0}', space=vmem, size = 0x2000, scoped, tag = 'input window, operand 7, single buffered']
    #allocation4 [shape = 's32[1]{0}', space=sflag, size = 0x4, scoped, tag = 'scoped memory for tpu_custom_call.1']
    #allocation5 [shape = 's32[1]{0}', space=sflag, size = 0x4, scoped, tag = 'scoped memory for tpu_custom_call.1']
    #allocation6 [shape = 'u8[8192]{0}', space=vmem, size = 0x2000, scoped, tag = 'output window, operand 0, single buffered']
    %18 = vsyncpa [#allocation4], 0
    %19 = vsyncpa [#allocation5], 0
    // Predicated region
    $region2: #{tpu_custom_call.1} parent=1 // pred_check
      _
    $region3: #{tpu_custom_call.1} parent=1 // pred_check_branch
      %21 = sbr.rel (0) target = $region5
    $region4: #{tpu_custom_call.1} parent=1 // pred_region
      _
    $region5: #{tpu_custom_call.1} parent=1 // pred_fallthru
      _
    // Predicated region
    $region6: #{tpu_custom_call.1} parent=1 // pred_check
      _
    $region7: #{tpu_custom_call.1} parent=1 // pred_check_branch
      %23 = sbr.rel (0) target = $region9
    $region8: #{tpu_custom_call.1} parent=1 // pred_region
      _
    $region9: #{tpu_custom_call.1} parent=1 // pred_fallthru
      _
    // Predicated region
    $region10: #{tpu_custom_call.1} parent=1 // pred_check
      _
    $region11: #{tpu_custom_call.1} parent=1 // pred_check_branch
      %25 = sbr.rel (0) target = $region13
    $region12: #{tpu_custom_call.1} parent=1 // pred_region
      _
    $region13: #{tpu_custom_call.1} parent=1 // pred_fallthru
      _
    // Predicated region
    $region14: #{tpu_custom_call.1} parent=1 // pred_check
      _
    $region15: #{tpu_custom_call.1} parent=1 // pred_check_branch
      %27 = sbr.rel (0) target = $region17
    $region16: #{tpu_custom_call.1} parent=1 // pred_region
      _
    $region17: #{tpu_custom_call.1} parent=1 // pred_fallthru
      _
    // Predicated region
    $region18: #{tpu_custom_call.1} parent=1 // pred_check
      _
    $region19: #{tpu_custom_call.1} parent=1 // pred_check_branch
      %29 = sbr.rel (0) target = $region21
    $region20: #{tpu_custom_call.1} parent=1 // pred_region
      _
    $region21: #{tpu_custom_call.1} parent=1 // pred_fallthru
      _
    // Predicated region
    $region22: #{tpu_custom_call.1} parent=1 // pred_check
      _
    $region23: #{tpu_custom_call.1} parent=1 // pred_check_branch
      %31 = sbr.rel (0) target = $region25
    $region24: #{tpu_custom_call.1} parent=1 // pred_region
      _
    $region25: #{tpu_custom_call.1} parent=1 // pred_fallthru
      _
    // Predicated region
    $region26: #{tpu_custom_call.1} parent=1 // pred_check
      _
    $region27: #{tpu_custom_call.1} parent=1 // pred_check_branch
      %33 = sbr.rel (0) target = $region29
    $region28: #{tpu_custom_call.1} parent=1 // pred_region
      _
    $region29: #{tpu_custom_call.1} parent=1 // pred_fallthru
      _
    // Predicated region
    $region30: #{tpu_custom_call.1} parent=1 // pred_check
      _
    $region31: #{tpu_custom_call.1} parent=1 // pred_check_branch
      %35 = sbr.rel (0) target = $region33
    $region32: #{tpu_custom_call.1} parent=1 // pred_region
      %37 = vsyncadd [#allocation4], 0
      %s38 = sshll.u32 %s7, 4
      %s39 = int_to_ptr.hbm [resolvable:$true] %s38
      %s40 = sshll.u32 [#allocation3], 4
      %s41 = int_to_ptr.vmem [resolvable:$true] %s40
      %46 = dma.hbm_to_vmem [thread:$0]  %s39, 256, %s41, [#allocation4], 64, 64, 4
    $region33: #{tpu_custom_call.1} parent=1 // pred_fallthru
      _
    // Predicated region
    $region34: #{tpu_custom_call.1} parent=1 // pred_check
      _
    $region35: #{tpu_custom_call.1} parent=1 // pred_check_branch
      %48 = sbr.rel (0) target = $region37
    $region36: #{tpu_custom_call.1} parent=1 // pred_region
      _
    $region37: #{tpu_custom_call.1} parent=1 // pred_fallthru
      _
    // Predicated region
    $region38: #{tpu_custom_call.1} parent=1 // pred_check
      _
    $region39: #{tpu_custom_call.1} parent=1 // pred_check_branch
      %50 = sbr.rel (0) target = $region41
    $region40: #{tpu_custom_call.1} parent=1 // pred_region
      _
    $region41: #{tpu_custom_call.1} parent=1 // pred_fallthru
      _
    // Predicated region
    $region42: #{tpu_custom_call.1} parent=1 // pred_check
      _
    $region43: #{tpu_custom_call.1} parent=1 // pred_check_branch
      %52 = sbr.rel (0) target = $region45
    $region44: #{tpu_custom_call.1} parent=1 // pred_region
      _
    $region45: #{tpu_custom_call.1} parent=1 // pred_fallthru
      _
    // Predicated region
    $region46: #{tpu_custom_call.1} parent=1 // pred_check
      _
    $region47: #{tpu_custom_call.1} parent=1 // pred_check_branch
      %54 = sbr.rel (0) target = $region49
    $region48: #{tpu_custom_call.1} parent=1 // pred_region
      _
    $region49: #{tpu_custom_call.1} parent=1 // pred_fallthru
      _
    // Predicated region
    $region50: #{tpu_custom_call.1} parent=1 // pred_check
      _
    $region51: #{tpu_custom_call.1} parent=1 // pred_check_branch
      %56 = sbr.rel (0) target = $region53
    $region52: #{tpu_custom_call.1} parent=1 // pred_region
      _
    $region53: #{tpu_custom_call.1} parent=1 // pred_fallthru
      _
    // Predicated region
    $region54: #{tpu_custom_call.1} parent=1 // pred_check
      _
    $region55: #{tpu_custom_call.1} parent=1 // pred_check_branch
      %58 = sbr.rel (0) target = $region57
    $region56: #{tpu_custom_call.1} parent=1 // pred_region
      %60 = dma.done [#allocation4], 256
    $region57: #{tpu_custom_call.1} parent=1 // pred_fallthru
      _
    %v62 = vld [vmem:[%s0] sm:$0xff]
    %v63 = vld [vmem:[%s0 + $0x8] sm:$0xff]
    %v64 = vpack.c.bf16 %v63, %v62
    %v65 = vld [vmem:[%s1] sm:$0xf]
    %v66 = vld [vmem:[%s1 + $0x4] sm:$0xf]
    %v67 = vld [vmem:[%s1 + $0x8] sm:$0xf]
    %v68 = vld [vmem:[%s1 + $0xc] sm:$0xf]
    %v69 = vld [vmem:[%s2] sm:$0x1]
    %v71 = vperm.slane %v69, 0
    %v77 = vunpack.c.l.b16 %v65
    %v78 = vunpack.c.l.b16 %v66
    %v79 = vunpack.c.l.b16 %v67
    %v80 = vunpack.c.l.b16 %v68
    %v81 = vpack.c.b16 %v78, %v77
    %v82 = vpack.c.b16 %v80, %v79
    %vm85 = vcmask 261120
    %v87 = vsel %vm85, %v64, 0
    %89 = vmatpush.bf16.msra.mxu0 0
    %90 = vmatpush.bf16.msra.mxu0 0
    %91 = vmatpush.bf16.msra.mxu0 0
    %92 = vmatpush.bf16.msra.mxu0 0
    %93 = vmatpush.bf16.msra.mxu0 0
    %94 = vmatpush.bf16.msra.mxu0 0
    %95 = vmatpush.bf16.msra.mxu0 %v82
    %96 = vmatpush.bf16.msra.mxu0 %v81
    %97 = vmatmul.bf16.gmra.mxu0 %v87
    %v98 = vpop.f32.mrf.mxu0
    %v99 = vadd.f32 %v71, %v98
    %v100 = vpop.f32.mrf.mxu0
    %v101 = vadd.f32 %v71, %v100
    %102 = vdwg.mxu0
    %v103 = vpack.c.bf16 %v99, %v99
    %v104 = vpack.c.bf16 %v101, %v101
    %v106 = vunpack.c.l.b16 %v103
    %v107 = vpack.c.b16 %v106, %v106
    %108 = vrot.lane.b32.xlu0 %v107, 96
    %v109 = vpop.permute.xlu0 %108
    %vm110 = vcmask 64512
    %v112 = vsel %vm110, %v103, 0
    %v115 = vsel %vm110, %v109, 0
    %117 = vmatpush.bf16.xpose.msra.mxu0 0
    %118 = vmatpush.bf16.xpose.msra.mxu0 0
    %119 = vmatpush.bf16.xpose.msra.mxu0 0
    %120 = vmatpush.bf16.xpose.msra.mxu0 0
    %121 = vmatpush.bf16.xpose.msra.mxu0 0
    %122 = vmatpush.bf16.xpose.msra.mxu0 0
    %123 = vmatpush.bf16.xpose.msra.mxu0 0
    %124 = vmatpush.bf16.xpose.msra.mxu0 %v115
    %125 = vmatmul.bf16.gmra.mxu0 %v112
    %v126 = vpop.f32.mrf.mxu0
    %v127 = vadd.f32 0.0, %v126
    %v128 = vpop.f32.mrf.mxu0
    %129 = vdwg.mxu0
    %v131 = vunpack.c.l.b16 %v104
    %v132 = vpack.c.b16 %v131, %v131
    %133 = vrot.lane.b32.xlu0 %v132, 96
    %v134 = vpop.permute.xlu0 %133
    %v136 = vsel %vm110, %v104, 0
    %v139 = vsel %vm110, %v134, 0
    %141 = vmatpush.bf16.xpose.msra.mxu0 0
    %142 = vmatpush.bf16.xpose.msra.mxu0 0
    %143 = vmatpush.bf16.xpose.msra.mxu0 0
    %144 = vmatpush.bf16.xpose.msra.mxu0 0
    %145 = vmatpush.bf16.xpose.msra.mxu0 0
    %146 = vmatpush.bf16.xpose.msra.mxu0 0
    %147 = vmatpush.bf16.xpose.msra.mxu0 0
    %148 = vmatpush.bf16.xpose.msra.mxu0 %v139
    %149 = vmatmul.bf16.gmra.mxu0 %v136
    %v150 = vpop.f32.mrf.mxu0
    %v151 = vadd.f32 0.0, %v150
    %v152 = vpop.f32.mrf.mxu0
    %153 = vdwg.mxu0
    %v154 = vsel %vm110, %v127, -inf
    %155 = vmax.xlane.f32.xlu0 %v154
    %v156 = vpop.xlane.xlu0 %155
    %v157 = vsel %vm110, %v151, -inf
    %158 = vmax.xlane.f32.xlu0 %v157
    %v159 = vpop.xlane.xlu0 %158
    %v160 = vsub.f32 %v127, %v156
    %v161 = vsub.f32 %v151, %v159
    %v162 = vmul.f32 %v160, 1.442695
    %v163 = vpow.pop %v162
    %v164 = vmul.f32 %v161, 1.442695
    %v165 = vpow.pop %v164
    %v166 = vsel %vm110, %v163, 0.0
    %167 = vadd.xlane.f32.xlu0 %v166
    %v168 = vpop.xlane.xlu0 %167
    %v169 = vsel %vm110, %v165, 0.0
    %170 = vadd.xlane.f32.xlu0 %v169
    %v171 = vpop.xlane.xlu0 %170
    %v172 = vrcp.pop %v168
    %v173 = vrcp.pop %v171
    %v174 = vmul.f32 %v163, %v172
    %v175 = vmul.f32 %v165, %v173
    %v176 = vpack.c.bf16 %v174, %v174
    %v177 = vpack.c.bf16 %v175, %v175
    %178 = vrot.lane.b32.xlu0 %v107, 64
    %v179 = vpop.permute.xlu0 %178
    %v181 = vsel %vm110, %v176, 0
    %vm183 = vcmask 1043456
    %v185 = vsel %vm183, %v179, 0
    %187 = vmatpush.bf16.msra.mxu0 0
    %188 = vmatpush.bf16.msra.mxu0 0
    %189 = vmatpush.bf16.msra.mxu0 0
    %190 = vmatpush.bf16.msra.mxu0 0
    %191 = vmatpush.bf16.msra.mxu0 0
    %192 = vmatpush.bf16.msra.mxu0 0
    %193 = vmatpush.bf16.msra.mxu0 0
    %194 = vmatpush.bf16.msra.mxu0 %v185
    %195 = vmatmul.bf16.gmra.mxu0 %v181
    %v196 = vpop.f32.mrf.mxu0
    %v197 = vadd.f32 0.0, %v196
    %v198 = vpop.f32.mrf.mxu0
    %199 = vdwg.mxu0
    %200 = vrot.lane.b32.xlu0 %v132, 64
    %v201 = vpop.permute.xlu0 %200
    %v203 = vsel %vm110, %v177, 0
    %v206 = vsel %vm183, %v201, 0
    %208 = vmatpush.bf16.msra.mxu0 0
    %209 = vmatpush.bf16.msra.mxu0 0
    %210 = vmatpush.bf16.msra.mxu0 0
    %211 = vmatpush.bf16.msra.mxu0 0
    %212 = vmatpush.bf16.msra.mxu0 0
    %213 = vmatpush.bf16.msra.mxu0 0
    %214 = vmatpush.bf16.msra.mxu0 0
    %215 = vmatpush.bf16.msra.mxu0 %v206
    %216 = vmatmul.bf16.gmra.mxu0 %v203
    %v217 = vpop.f32.mrf.mxu0
    %v218 = vadd.f32 0.0, %v217
    %v219 = vpop.f32.mrf.mxu0
    %220 = vdwg.mxu0
    %221 = vst.msk [vmem:[#allocation2] sm:$0xff] %vm110, %v197
    %222 = vst.msk [vmem:[#allocation2 + $0x8] sm:$0xff] %vm110, %v218
    %223 = vrot.lane.b32.xlu0 %v107, 120
    %v224 = vpop.permute.xlu0 %223
    %225 = vrot.lane.b32.xlu0 %v107, 88
    %v226 = vpop.permute.xlu0 %225
    %v228 = vsel %vm110, %v224, 0
    %v231 = vsel %vm110, %v226, 0
    %233 = vmatpush.bf16.xpose.msra.mxu0 0
    %234 = vmatpush.bf16.xpose.msra.mxu0 0
    %235 = vmatpush.bf16.xpose.msra.mxu0 0
    %236 = vmatpush.bf16.xpose.msra.mxu0 0
    %237 = vmatpush.bf16.xpose.msra.mxu0 0
    %238 = vmatpush.bf16.xpose.msra.mxu0 0
    %239 = vmatpush.bf16.xpose.msra.mxu0 0
    %240 = vmatpush.bf16.xpose.msra.mxu0 %v231
    %241 = vmatmul.bf16.gmra.mxu0 %v228
    %v242 = vpop.f32.mrf.mxu0
    %v243 = vadd.f32 0.0, %v242
    %v244 = vpop.f32.mrf.mxu0
    %245 = vdwg.mxu0
    %246 = vrot.lane.b32.xlu0 %v132, 120
    %v247 = vpop.permute.xlu0 %246
    %248 = vrot.lane.b32.xlu0 %v132, 88
    %v249 = vpop.permute.xlu0 %248
    %v251 = vsel %vm110, %v247, 0
    %v254 = vsel %vm110, %v249, 0
    %256 = vmatpush.bf16.xpose.msra.mxu0 0
    %257 = vmatpush.bf16.xpose.msra.mxu0 0
    %258 = vmatpush.bf16.xpose.msra.mxu0 0
    %259 = vmatpush.bf16.xpose.msra.mxu0 0
    %260 = vmatpush.bf16.xpose.msra.mxu0 0
    %261 = vmatpush.bf16.xpose.msra.mxu0 0
    %262 = vmatpush.bf16.xpose.msra.mxu0 0
    %263 = vmatpush.bf16.xpose.msra.mxu0 %v254
    %264 = vmatmul.bf16.gmra.mxu0 %v251
    %v265 = vpop.f32.mrf.mxu0
    %v266 = vadd.f32 0.0, %v265
    %v267 = vpop.f32.mrf.mxu0
    %268 = vdwg.mxu0
    %v269 = vsel %vm110, %v243, -inf
    %270 = vmax.xlane.f32.xlu0 %v269
    %v271 = vpop.xlane.xlu0 %270
    %v272 = vsel %vm110, %v266, -inf
    %273 = vmax.xlane.f32.xlu0 %v272
    %v274 = vpop.xlane.xlu0 %273
    %v275 = vsub.f32 %v243, %v271
    %v276 = vsub.f32 %v266, %v274
    %v277 = vmul.f32 %v275, 1.442695
    %v278 = vpow.pop %v277
    %v279 = vmul.f32 %v276, 1.442695
    %v280 = vpow.pop %v279
    %v281 = vsel %vm110, %v278, 0.0
    %282 = vadd.xlane.f32.xlu0 %v281
    %v283 = vpop.xlane.xlu0 %282
    %v284 = vsel %vm110, %v280, 0.0
    %285 = vadd.xlane.f32.xlu0 %v284
    %v286 = vpop.xlane.xlu0 %285
    %v287 = vrcp.pop %v283
    %v288 = vrcp.pop %v286
    %v289 = vmul.f32 %v278, %v287
    %v290 = vmul.f32 %v280, %v288
    %v291 = vpack.c.bf16 %v289, %v289
    %v292 = vpack.c.bf16 %v290, %v290
    %293 = vrot.lane.b32.xlu0 %v107, 56
    %v294 = vpop.permute.xlu0 %293
    %v296 = vsel %vm110, %v291, 0
    %v299 = vsel %vm183, %v294, 0
    %301 = vmatpush.bf16.msra.mxu0 0
    %302 = vmatpush.bf16.msra.mxu0 0
    %303 = vmatpush.bf16.msra.mxu0 0
    %304 = vmatpush.bf16.msra.mxu0 0
    %305 = vmatpush.bf16.msra.mxu0 0
    %306 = vmatpush.bf16.msra.mxu0 0
    %307 = vmatpush.bf16.msra.mxu0 0
    %308 = vmatpush.bf16.msra.mxu0 %v299
    %309 = vmatmul.bf16.gmra.mxu0 %v296
    %v310 = vpop.f32.mrf.mxu0
    %v311 = vadd.f32 0.0, %v310
    %v312 = vpop.f32.mrf.mxu0
    %313 = vdwg.mxu0
    %314 = vrot.lane.b32.xlu0 %v132, 56
    %v315 = vpop.permute.xlu0 %314
    %v317 = vsel %vm110, %v292, 0
    %v320 = vsel %vm183, %v315, 0
    %322 = vmatpush.bf16.msra.mxu0 0
    %323 = vmatpush.bf16.msra.mxu0 0
    %324 = vmatpush.bf16.msra.mxu0 0
    %325 = vmatpush.bf16.msra.mxu0 0
    %326 = vmatpush.bf16.msra.mxu0 0
    %327 = vmatpush.bf16.msra.mxu0 0
    %328 = vmatpush.bf16.msra.mxu0 0
    %329 = vmatpush.bf16.msra.mxu0 %v320
    %330 = vmatmul.bf16.gmra.mxu0 %v317
    %v331 = vpop.f32.mrf.mxu0
    %v332 = vadd.f32 0.0, %v331
    %v333 = vpop.f32.mrf.mxu0
    %334 = vdwg.mxu0
    %337 = vrot.lane.b32.xlu0 %v311, 8
    %v338 = vpop.permute.xlu0 %337
    %339 = vrot.lane.b32.xlu0 %v332, 8
    %v340 = vpop.permute.xlu0 %339
    %vm343 = vcmask 130112
    %344 = vst.msk [vmem:[#allocation2] sm:$0xff] %vm343, %v338
    %345 = vst.msk [vmem:[#allocation2 + $0x8] sm:$0xff] %vm343, %v340
    %346 = vrot.lane.b32.xlu0 %v107, 112
    %v347 = vpop.permute.xlu0 %346
    %348 = vrot.lane.b32.xlu0 %v107, 80
    %v349 = vpop.permute.xlu0 %348
    %v351 = vsel %vm110, %v347, 0
    %v354 = vsel %vm110, %v349, 0
    %356 = vmatpush.bf16.xpose.msra.mxu0 0
    %357 = vmatpush.bf16.xpose.msra.mxu0 0
    %358 = vmatpush.bf16.xpose.msra.mxu0 0
    %359 = vmatpush.bf16.xpose.msra.mxu0 0
    %360 = vmatpush.bf16.xpose.msra.mxu0 0
    %361 = vmatpush.bf16.xpose.msra.mxu0 0
    %362 = vmatpush.bf16.xpose.msra.mxu0 0
    %363 = vmatpush.bf16.xpose.msra.mxu0 %v354
    %364 = vmatmul.bf16.gmra.mxu0 %v351
    %v365 = vpop.f32.mrf.mxu0
    %v366 = vadd.f32 0.0, %v365
    %v367 = vpop.f32.mrf.mxu0
    %368 = vdwg.mxu0
    %369 = vrot.lane.b32.xlu0 %v132, 112
    %v370 = vpop.permute.xlu0 %369
    %371 = vrot.lane.b32.xlu0 %v132, 80
    %v372 = vpop.permute.xlu0 %371
    %v374 = vsel %vm110, %v370, 0
    %v377 = vsel %vm110, %v372, 0
    %379 = vmatpush.bf16.xpose.msra.mxu0 0
    %380 = vmatpush.bf16.xpose.msra.mxu0 0
    %381 = vmatpush.bf16.xpose.msra.mxu0 0
    %382 = vmatpush.bf16.xpose.msra.mxu0 0
    %383 = vmatpush.bf16.xpose.msra.mxu0 0
    %384 = vmatpush.bf16.xpose.msra.mxu0 0
    %385 = vmatpush.bf16.xpose.msra.mxu0 0
    %386 = vmatpush.bf16.xpose.msra.mxu0 %v377
    %387 = vmatmul.bf16.gmra.mxu0 %v374
    %v388 = vpop.f32.mrf.mxu0
    %v389 = vadd.f32 0.0, %v388
    %v390 = vpop.f32.mrf.mxu0
    %391 = vdwg.mxu0
    %v392 = vsel %vm110, %v366, -inf
    %393 = vmax.xlane.f32.xlu0 %v392
    %v394 = vpop.xlane.xlu0 %393
    %v395 = vsel %vm110, %v389, -inf
    %396 = vmax.xlane.f32.xlu0 %v395
    %v397 = vpop.xlane.xlu0 %396
    %v398 = vsub.f32 %v366, %v394
    %v399 = vsub.f32 %v389, %v397
    %v400 = vmul.f32 %v398, 1.442695
    %v401 = vpow.pop %v400
    %v402 = vmul.f32 %v399, 1.442695
    %v403 = vpow.pop %v402
    %v404 = vsel %vm110, %v401, 0.0
    %405 = vadd.xlane.f32.xlu0 %v404
    %v406 = vpop.xlane.xlu0 %405
    %v407 = vsel %vm110, %v403, 0.0
    %408 = vadd.xlane.f32.xlu0 %v407
    %v409 = vpop.xlane.xlu0 %408
    %v410 = vrcp.pop %v406
    %v411 = vrcp.pop %v409
    %v412 = vmul.f32 %v401, %v410
    %v413 = vmul.f32 %v403, %v411
    %v414 = vpack.c.bf16 %v412, %v412
    %v415 = vpack.c.bf16 %v413, %v413
    %416 = vrot.lane.b32.xlu0 %v107, 48
    %v417 = vpop.permute.xlu0 %416
    %v419 = vsel %vm110, %v414, 0
    %v422 = vsel %vm183, %v417, 0
    %424 = vmatpush.bf16.msra.mxu0 0
    %425 = vmatpush.bf16.msra.mxu0 0
    %426 = vmatpush.bf16.msra.mxu0 0
    %427 = vmatpush.bf16.msra.mxu0 0
    %428 = vmatpush.bf16.msra.mxu0 0
    %429 = vmatpush.bf16.msra.mxu0 0
    %430 = vmatpush.bf16.msra.mxu0 0
    %431 = vmatpush.bf16.msra.mxu0 %v422
    %432 = vmatmul.bf16.gmra.mxu0 %v419
    %v433 = vpop.f32.mrf.mxu0
    %v434 = vadd.f32 0.0, %v433
    %v435 = vpop.f32.mrf.mxu0
    %436 = vdwg.mxu0
    %437 = vrot.lane.b32.xlu0 %v132, 48
    %v438 = vpop.permute.xlu0 %437
    %v440 = vsel %vm110, %v415, 0
    %v443 = vsel %vm183, %v438, 0
    %445 = vmatpush.bf16.msra.mxu0 0
    %446 = vmatpush.bf16.msra.mxu0 0
    %447 = vmatpush.bf16.msra.mxu0 0
    %448 = vmatpush.bf16.msra.mxu0 0
    %449 = vmatpush.bf16.msra.mxu0 0
    %450 = vmatpush.bf16.msra.mxu0 0
    %451 = vmatpush.bf16.msra.mxu0 0
    %452 = vmatpush.bf16.msra.mxu0 %v443
    %453 = vmatmul.bf16.gmra.mxu0 %v440
    %v454 = vpop.f32.mrf.mxu0
    %v455 = vadd.f32 0.0, %v454
    %v456 = vpop.f32.mrf.mxu0
    %457 = vdwg.mxu0
    %460 = vrot.lane.b32.xlu0 %v434, 16
    %v461 = vpop.permute.xlu0 %460
    %462 = vrot.lane.b32.xlu0 %v455, 16
    %v463 = vpop.permute.xlu0 %462
    %vm466 = vcmask 195712
    %467 = vst.msk [vmem:[#allocation2] sm:$0xff] %vm466, %v461
    %468 = vst.msk [vmem:[#allocation2 + $0x8] sm:$0xff] %vm466, %v463
    %469 = vrot.lane.b32.xlu0 %v107, 104
    %v470 = vpop.permute.xlu0 %469
    %471 = vrot.lane.b32.xlu0 %v107, 72
    %v472 = vpop.permute.xlu0 %471
    %v474 = vsel %vm110, %v470, 0
    %v477 = vsel %vm110, %v472, 0
    %479 = vmatpush.bf16.xpose.msra.mxu0 0
    %480 = vmatpush.bf16.xpose.msra.mxu0 0
    %481 = vmatpush.bf16.xpose.msra.mxu0 0
    %482 = vmatpush.bf16.xpose.msra.mxu0 0
    %483 = vmatpush.bf16.xpose.msra.mxu0 0
    %484 = vmatpush.bf16.xpose.msra.mxu0 0
    %485 = vmatpush.bf16.xpose.msra.mxu0 0
    %486 = vmatpush.bf16.xpose.msra.mxu0 %v477
    %487 = vmatmul.bf16.gmra.mxu0 %v474
    %v488 = vpop.f32.mrf.mxu0
    %v489 = vadd.f32 0.0, %v488
    %v490 = vpop.f32.mrf.mxu0
    %491 = vdwg.mxu0
    %492 = vrot.lane.b32.xlu0 %v132, 104
    %v493 = vpop.permute.xlu0 %492
    %494 = vrot.lane.b32.xlu0 %v132, 72
    %v495 = vpop.permute.xlu0 %494
    %v497 = vsel %vm110, %v493, 0
    %v500 = vsel %vm110, %v495, 0
    %502 = vmatpush.bf16.xpose.msra.mxu0 0
    %503 = vmatpush.bf16.xpose.msra.mxu0 0
    %504 = vmatpush.bf16.xpose.msra.mxu0 0
    %505 = vmatpush.bf16.xpose.msra.mxu0 0
    %506 = vmatpush.bf16.xpose.msra.mxu0 0
    %507 = vmatpush.bf16.xpose.msra.mxu0 0
    %508 = vmatpush.bf16.xpose.msra.mxu0 0
    %509 = vmatpush.bf16.xpose.msra.mxu0 %v500
    %510 = vmatmul.bf16.gmra.mxu0 %v497
    %v511 = vpop.f32.mrf.mxu0
    %v512 = vadd.f32 0.0, %v511
    %v513 = vpop.f32.mrf.mxu0
    %514 = vdwg.mxu0
    %v515 = vsel %vm110, %v489, -inf
    %516 = vmax.xlane.f32.xlu0 %v515
    %v517 = vpop.xlane.xlu0 %516
    %v518 = vsel %vm110, %v512, -inf
    %519 = vmax.xlane.f32.xlu0 %v518
    %v520 = vpop.xlane.xlu0 %519
    %v521 = vsub.f32 %v489, %v517
    %v522 = vsub.f32 %v512, %v520
    %v523 = vmul.f32 %v521, 1.442695
    %v524 = vpow.pop %v523
    %v525 = vmul.f32 %v522, 1.442695
    %v526 = vpow.pop %v525
    %v527 = vsel %vm110, %v524, 0.0
    %528 = vadd.xlane.f32.xlu0 %v527
    %v529 = vpop.xlane.xlu0 %528
    %v530 = vsel %vm110, %v526, 0.0
    %531 = vadd.xlane.f32.xlu0 %v530
    %v532 = vpop.xlane.xlu0 %531
    %v533 = vrcp.pop %v529
    %v534 = vrcp.pop %v532
    %v535 = vmul.f32 %v524, %v533
    %v536 = vmul.f32 %v526, %v534
    %v537 = vpack.c.bf16 %v535, %v535
    %v538 = vpack.c.bf16 %v536, %v536
    %539 = vrot.lane.b32.xlu0 %v107, 40
    %v540 = vpop.permute.xlu0 %539
    %v542 = vsel %vm110, %v537, 0
    %v545 = vsel %vm183, %v540, 0
    %547 = vmatpush.bf16.msra.mxu0 0
    %548 = vmatpush.bf16.msra.mxu0 0
    %549 = vmatpush.bf16.msra.mxu0 0
    %550 = vmatpush.bf16.msra.mxu0 0
    %551 = vmatpush.bf16.msra.mxu0 0
    %552 = vmatpush.bf16.msra.mxu0 0
    %553 = vmatpush.bf16.msra.mxu0 0
    %554 = vmatpush.bf16.msra.mxu0 %v545
    %555 = vmatmul.bf16.gmra.mxu0 %v542
    %v556 = vpop.f32.mrf.mxu0
    %v557 = vadd.f32 0.0, %v556
    %v558 = vpop.f32.mrf.mxu0
    %559 = vdwg.mxu0
    %560 = vrot.lane.b32.xlu0 %v132, 40
    %v561 = vpop.permute.xlu0 %560
    %v563 = vsel %vm110, %v538, 0
    %v566 = vsel %vm183, %v561, 0
    %568 = vmatpush.bf16.msra.mxu0 0
    %569 = vmatpush.bf16.msra.mxu0 0
    %570 = vmatpush.bf16.msra.mxu0 0
    %571 = vmatpush.bf16.msra.mxu0 0
    %572 = vmatpush.bf16.msra.mxu0 0
    %573 = vmatpush.bf16.msra.mxu0 0
    %574 = vmatpush.bf16.msra.mxu0 0
    %575 = vmatpush.bf16.msra.mxu0 %v566
    %576 = vmatmul.bf16.gmra.mxu0 %v563
    %v577 = vpop.f32.mrf.mxu0
    %v578 = vadd.f32 0.0, %v577
    %v579 = vpop.f32.mrf.mxu0
    %580 = vdwg.mxu0
    %583 = vrot.lane.b32.xlu0 %v557, 24
    %v584 = vpop.permute.xlu0 %583
    %585 = vrot.lane.b32.xlu0 %v578, 24
    %v586 = vpop.permute.xlu0 %585
    %vm589 = vcmask 261312
    %590 = vst.msk [vmem:[#allocation2] sm:$0xff] %vm589, %v584
    %591 = vst.msk [vmem:[#allocation2 + $0x8] sm:$0xff] %vm589, %v586
    %v592 = vld [vmem:[#allocation2] sm:$0xff]
    %v593 = vld [vmem:[#allocation2 + $0x8] sm:$0xff]
    %v594 = vpack.c.bf16 %v593, %v592
    %v595 = vld [vmem:[%s3] sm:$0xf]
    %v596 = vld [vmem:[%s3 + $0x4] sm:$0xf]
    %v597 = vld [vmem:[%s3 + $0x8] sm:$0xf]
    %v598 = vld [vmem:[%s3 + $0xc] sm:$0xf]
    %v599 = vld [vmem:[%s4] sm:$0x1]
    %v601 = vperm.slane %v599, 0
    %v607 = vunpack.c.l.b16 %v595
    %v608 = vunpack.c.l.b16 %v596
    %v609 = vunpack.c.l.b16 %v597
    %v610 = vunpack.c.l.b16 %v598
    %v611 = vpack.c.b16 %v608, %v607
    %v612 = vpack.c.b16 %v610, %v609
    %v616 = vsel %vm85, %v594, 0
    %618 = vmatpush.bf16.msra.mxu0 0
    %619 = vmatpush.bf16.msra.mxu0 0
    %620 = vmatpush.bf16.msra.mxu0 0
    %621 = vmatpush.bf16.msra.mxu0 0
    %622 = vmatpush.bf16.msra.mxu0 0
    %623 = vmatpush.bf16.msra.mxu0 0
    %624 = vmatpush.bf16.msra.mxu0 %v612
    %625 = vmatpush.bf16.msra.mxu0 %v611
    %626 = vmatmul.bf16.gmra.mxu0 %v616
    %v627 = vpop.f32.mrf.mxu0
    %v628 = vadd.f32 %v601, %v627
    %v629 = vpop.f32.mrf.mxu0
    %v630 = vadd.f32 %v601, %v629
    %631 = vdwg.mxu0
    %v632 = vadd.f32 %v62, %v628
    %v633 = vadd.f32 %v63, %v630
    %v634 = vld [vmem:[%s5] sm:$0x1]
    %v635 = vld [vmem:[%s6] sm:$0x1]
    %v636 = vsel %vm85, %v632, 0.0
    %637 = vadd.xlane.f32.xlu0 %v636
    %v638 = vpop.xlane.xlu0 %637
    %v639 = vsel %vm85, %v633, 0.0
    %640 = vadd.xlane.f32.xlu0 %v639
    %v641 = vpop.xlane.xlu0 %640
    %v642 = vrcp.pop 32.0
    %v643 = vmul.f32 32.0, %v642
    %v644 = vsub.f32 1.0, %v643
    %v645 = vmul.f32 %v642, %v644
    %v646 = vadd.f32 %v642, %v645
    %vm647 = vweird.f32 %v642
    %v648 = vsel %vm647, %v642, %v646
    %v649 = vmul.f32 %v638, %v648
    %v650 = vmul.f32 %v641, %v648
    %v651 = vsub.f32 %v632, %v649
    %v652 = vsub.f32 %v633, %v650
    %v653 = vmul.f32 %v651, %v651
    %v654 = vmul.f32 %v652, %v652
    %v655 = vsel %vm85, %v653, 0.0
    %656 = vadd.xlane.f32.xlu0 %v655
    %v657 = vpop.xlane.xlu0 %656
    %v658 = vsel %vm85, %v654, 0.0
    %659 = vadd.xlane.f32.xlu0 %v658
    %v660 = vpop.xlane.xlu0 %659
    %v661 = vmul.f32 %v657, %v648
    %v662 = vmul.f32 %v660, %v648
    %v663 = vadd.f32 %v661, 1e-05
    %v664 = vadd.f32 %v662, 1e-05
    %v665 = vrsqrt.pop %v663
    %v666 = vmul.f32 %v665, %v663
    %v667 = vmul.f32 %v666, %v665
    %v668 = vmul.f32 0.5, %v667
    %v669 = vsub.f32 1.5, %v668
    %v670 = vmul.f32 %v665, %v669
    %vm671 = vweird.f32 %v663
    %vm672 = vweird.f32 %v665
    %vm673 = vmor %vm671, %vm672
    %v674 = vsel %vm673, %v665, %v670
    %v675 = vrsqrt.pop %v664
    %v676 = vmul.f32 %v675, %v664
    %v677 = vmul.f32 %v676, %v675
    %v678 = vmul.f32 0.5, %v677
    %v679 = vsub.f32 1.5, %v678
    %v680 = vmul.f32 %v675, %v679
    %vm681 = vweird.f32 %v664
    %vm682 = vweird.f32 %v675
    %vm683 = vmor %vm681, %vm682
    %v684 = vsel %vm683, %v675, %v680
    %v685 = vmul.f32 %v651, %v674
    %v686 = vmul.f32 %v652, %v684
    %v688 = vperm.slane %v634, 0
    %v690 = vmul.f32 %v685, %v688
    %v691 = vmul.f32 %v686, %v688
    %v693 = vperm.slane %v635, 0
    %v695 = vadd.f32 %v690, %v693
    %v696 = vadd.f32 %v691, %v693
    %v697 = vpack.c.bf16 %v696, %v695
    %v698 = vld [vmem:[#allocation3] sm:$0xf]
    %v699 = vld [vmem:[#allocation3 + $0x4] sm:$0xf]
    %v700 = vld [vmem:[#allocation3 + $0x8] sm:$0xf]
    %v701 = vld [vmem:[#allocation3 + $0xc] sm:$0xf]
    %v702 = vld [vmem:[%s8] sm:$0x1]
    %v704 = vperm.slane %v702, 0
    %v710 = vunpack.c.l.b16 %v698
    %v711 = vunpack.c.l.b16 %v699
    %v712 = vunpack.c.l.b16 %v700
    %v713 = vunpack.c.l.b16 %v701
    %v714 = vpack.c.b16 %v711, %v710
    %v715 = vpack.c.b16 %v713, %v712
    %v719 = vsel %vm85, %v697, 0
    %721 = vmatpush.bf16.msra.mxu0 0
    %722 = vmatpush.bf16.msra.mxu0 0
    %723 = vmatpush.bf16.msra.mxu0 0
    %724 = vmatpush.bf16.msra.mxu0 0
    %725 = vmatpush.bf16.msra.mxu0 0
    %726 = vmatpush.bf16.msra.mxu0 0
    %727 = vmatpush.bf16.msra.mxu0 %v715
    %728 = vmatpush.bf16.msra.mxu0 %v714
    %729 = vmatmul.bf16.gmra.mxu0 %v719
    %v730 = vpop.f32.mrf.mxu0
    %v731 = vadd.f32 %v704, %v730
    %v732 = vpop.f32.mrf.mxu0
    %v733 = vadd.f32 %v704, %v732
    %734 = vdwg.mxu0
    %v735 = vmax.f32 %v731, 0.0
    %v736 = vmax.f32 %v733, 0.0
    %v737 = vpack.c.bf16 %v736, %v735
    %v738 = vld [vmem:[%s9] sm:$0xf]
    %v739 = vld [vmem:[%s9 + $0x4] sm:$0xf]
    %v740 = vld [vmem:[%s9 + $0x8] sm:$0xf]
    %v741 = vld [vmem:[%s9 + $0xc] sm:$0xf]
    %v742 = vld [vmem:[%s9 + $0x10] sm:$0xf]
    %v743 = vld [vmem:[%s9 + $0x14] sm:$0xf]
    %v744 = vld [vmem:[%s9 + $0x18] sm:$0xf]
    %v745 = vld [vmem:[%s9 + $0x1c] sm:$0xf]
    %v746 = vld [vmem:[%s10] sm:$0x1]
    %v748 = vperm.slane %v746, 0
    %v758 = vunpack.c.l.b16 %v738
    %v759 = vunpack.c.l.b16 %v739
    %v760 = vunpack.c.l.b16 %v740
    %v761 = vunpack.c.l.b16 %v741
    %v762 = vunpack.c.l.b16 %v742
    %v763 = vunpack.c.l.b16 %v743
    %v764 = vunpack.c.l.b16 %v744
    %v765 = vunpack.c.l.b16 %v745
    %v766 = vpack.c.b16 %v759, %v758
    %v767 = vpack.c.b16 %v761, %v760
    %v768 = vpack.c.b16 %v763, %v762
    %v769 = vpack.c.b16 %v765, %v764
    %vm774 = vcmask 523264
    %v776 = vsel %vm774, %v737, 0
    %778 = vmatpush.bf16.msra.mxu0 0
    %779 = vmatpush.bf16.msra.mxu0 0
    %780 = vmatpush.bf16.msra.mxu0 0
    %781 = vmatpush.bf16.msra.mxu0 0
    %782 = vmatpush.bf16.msra.mxu0 %v769
    %783 = vmatpush.bf16.msra.mxu0 %v768
    %784 = vmatpush.bf16.msra.mxu0 %v767
    %785 = vmatpush.bf16.msra.mxu0 %v766
    %786 = vmatmul.bf16.gmra.mxu0 %v776
    %v787 = vpop.f32.mrf.mxu0
    %v788 = vadd.f32 %v748, %v787
    %v789 = vpop.f32.mrf.mxu0
    %v790 = vadd.f32 %v748, %v789
    %791 = vdwg.mxu0
    %v792 = vadd.f32 %v695, %v788
    %v793 = vadd.f32 %v696, %v790
    %v794 = vld [vmem:[%s11] sm:$0x1]
    %v795 = vld [vmem:[%s12] sm:$0x1]
    %v796 = vsel %vm85, %v792, 0.0
    %797 = vadd.xlane.f32.xlu0 %v796
    %v798 = vpop.xlane.xlu0 %797
    %v799 = vsel %vm85, %v793, 0.0
    %800 = vadd.xlane.f32.xlu0 %v799
    %v801 = vpop.xlane.xlu0 %800
    %v802 = vmul.f32 %v798, %v648
    %v803 = vmul.f32 %v801, %v648
    %v804 = vsub.f32 %v792, %v802
    %v805 = vsub.f32 %v793, %v803
    %v806 = vmul.f32 %v804, %v804
    %v807 = vmul.f32 %v805, %v805
    %v808 = vsel %vm85, %v806, 0.0
    %809 = vadd.xlane.f32.xlu0 %v808
    %v810 = vpop.xlane.xlu0 %809
    %v811 = vsel %vm85, %v807, 0.0
    %812 = vadd.xlane.f32.xlu0 %v811
    %v813 = vpop.xlane.xlu0 %812
    %v814 = vmul.f32 %v810, %v648
    %v815 = vmul.f32 %v813, %v648
    %v816 = vadd.f32 %v814, 1e-05
    %v817 = vadd.f32 %v815, 1e-05
    %v818 = vrsqrt.pop %v816
    %v819 = vmul.f32 %v818, %v816
    %v820 = vmul.f32 %v819, %v818
    %v821 = vmul.f32 0.5, %v820
    %v822 = vsub.f32 1.5, %v821
    %v823 = vmul.f32 %v818, %v822
    %vm824 = vweird.f32 %v816
    %vm825 = vweird.f32 %v818
    %vm826 = vmor %vm824, %vm825
    %v827 = vsel %vm826, %v818, %v823
    %v828 = vrsqrt.pop %v817
    %v829 = vmul.f32 %v828, %v817
    %v830 = vmul.f32 %v829, %v828
    %v831 = vmul.f32 0.5, %v830
    %v832 = vsub.f32 1.5, %v831
    %v833 = vmul.f32 %v828, %v832
    %vm834 = vweird.f32 %v817
    %vm835 = vweird.f32 %v828
    %vm836 = vmor %vm834, %vm835
    %v837 = vsel %vm836, %v828, %v833
    %v838 = vmul.f32 %v804, %v827
    %v839 = vmul.f32 %v805, %v837
    %v841 = vperm.slane %v794, 0
    %v843 = vmul.f32 %v838, %v841
    %v844 = vmul.f32 %v839, %v841
    %v846 = vperm.slane %v795, 0
    %v848 = vadd.f32 %v843, %v846
    %v849 = vadd.f32 %v844, %v846
    %850 = vst.msk [vmem:[#allocation6] sm:$0xff] %vm85, %v848
    %851 = vst.msk [vmem:[#allocation6 + $0x8] sm:$0xff] %vm85, %v849
    // Predicated region
    $region58: #{tpu_custom_call.1} parent=1 // pred_check
      _
    $region59: #{tpu_custom_call.1} parent=1 // pred_check_branch
      %853 = sbr.rel (0) target = $region61
    $region60: #{tpu_custom_call.1} parent=1 // pred_region
      %855 = vsyncadd [#allocation5], 0
      %s856 = sshll.u32 [#allocation6], 4
      %s857 = int_to_ptr.vmem [resolvable:$true] %s856
      %s858 = sshll.u32 %s13, 4
      %s859 = int_to_ptr.hbm [resolvable:$true] %s858
      %864 = dma.vmem_to_hbm [thread:$0]  %s857, 256, %s859, [#allocation5], 128, 128, 8
    $region61: #{tpu_custom_call.1} parent=1 // pred_fallthru
      _
    // Predicated region
    $region62: #{tpu_custom_call.1} parent=1 // pred_check
      _
    $region63: #{tpu_custom_call.1} parent=1 // pred_check_branch
      %866 = sbr.rel (0) target = $region65
    $region64: #{tpu_custom_call.1} parent=1 // pred_region
      %868 = dma.done [#allocation5], 256
    $region65: #{tpu_custom_call.1} parent=1 // pred_fallthru
      _
    %869 = vsyncpa [#allocation4], 1
    %870 = vsyncpa [#allocation5], 1

// kernel: tpu_custom_call.1
$region0: #{tpu_custom_call.1}
  #allocation0 [shape = 'u32[]', space=smem, size = 0x4, offset = 0x4, fixed_abs, tag = 'smem constant byte address 0x4 - core index']
  #allocation1 [shape = 'u32[72,128]{1,0:T(1,128)}', space=vmem, size = 0x9000, scoped, tag = 'internal scratch']
  #allocation2 [shape = 'f32[16,32]{1,0:T(8,128)}', space=vmem, size = 0x2000, scoped, tag = 'scratch operand']
  %s0 = inlined_call_operand.vmem [shape: f32[2,8,32], index: 0, kind: input, shape index: {}]
  %s1 = inlined_call_operand.vmem [shape: bf16[32,96], index: 1, kind: input, shape index: {}]
  %s2 = inlined_call_operand.vmem [shape: f32[1,96], index: 2, kind: input, shape index: {}]
  %s3 = inlined_call_operand.vmem [shape: bf16[32,32], index: 3, kind: input, shape index: {}]
  %s4 = inlined_call_operand.vmem [shape: f32[1,32], index: 4, kind: input, shape index: {}]
  %s5 = inlined_call_operand.vmem [shape: f32[1,32], index: 5, kind: input, shape index: {}]
  %s6 = inlined_call_operand.vmem [shape: f32[1,32], index: 6, kind: input, shape index: {}]
  %s7 = inlined_call_operand.hbm [shape: bf16[32,64], index: 7, kind: input, shape index: {}]
  %s8 = inlined_call_operand.vmem [shape: f32[1,64], index: 8, kind: input, shape index: {}]
  %s9 = inlined_call_operand.vmem [shape: bf16[64,32], index: 9, kind: input, shape index: {}]
  %s10 = inlined_call_operand.vmem [shape: f32[1,32], index: 10, kind: input, shape index: {}]
  %s11 = inlined_call_operand.vmem [shape: f32[1,32], index: 11, kind: input, shape index: {}]
  %s12 = inlined_call_operand.vmem [shape: f32[1,32], index: 12, kind: input, shape index: {}]
  %s13 = inlined_call_operand.hbm [shape: f32[2,8,32], index: 13, kind: output, shape index: {}]
  %s14 = sld [smem:[#allocation0]]
  $region66: #{tpu_custom_call.1} parent=0
    _
  %s16 = ssub.s32 1, %s14
  %s17 = scalar_select 0, %s16, %s14
  $region1: #{tpu_custom_call.1} parent=0
    #allocation3 [shape = 'u8[8192]{0}', space=vmem, size = 0x2000, scoped, tag = 'input window, operand 7, single buffered']
    #allocation4 [shape = 's32[1]{0}', space=sflag, size = 0x4, scoped, tag = 'scoped memory for tpu_custom_call.1']
    #allocation5 [shape = 's32[1]{0}', space=sflag, size = 0x4, scoped, tag = 'scoped memory for tpu_custom_call.1']
    #allocation6 [shape = 'u8[8192]{0}', space=vmem, size = 0x2000, scoped, tag = 'output window, operand 0, single buffered']
    %18 = vsyncpa [#allocation4], 0
    %19 = vsyncpa [#allocation5], 0
    // Predicated region
    $region2: #{tpu_custom_call.1} parent=1 // pred_check
      _
    $region3: #{tpu_custom_call.1} parent=1 // pred_check_branch
      %21 = sbr.rel (0) target = $region5
    $region4: #{tpu_custom_call.1} parent=1 // pred_region
      _
    $region5: #{tpu_custom_call.1} parent=1 // pred_fallthru
      _
    // Predicated region
    $region6: #{tpu_custom_call.1} parent=1 // pred_check
      _
    $region7: #{tpu_custom_call.1} parent=1 // pred_check_branch
      %23 = sbr.rel (0) target = $region9
    $region8: #{tpu_custom_call.1} parent=1 // pred_region
      _
    $region9: #{tpu_custom_call.1} parent=1 // pred_fallthru
      _
    // Predicated region
    $region10: #{tpu_custom_call.1} parent=1 // pred_check
      _
    $region11: #{tpu_custom_call.1} parent=1 // pred_check_branch
      %25 = sbr.rel (0) target = $region13
    $region12: #{tpu_custom_call.1} parent=1 // pred_region
      _
    $region13: #{tpu_custom_call.1} parent=1 // pred_fallthru
      _
    // Predicated region
    $region14: #{tpu_custom_call.1} parent=1 // pred_check
      _
    $region15: #{tpu_custom_call.1} parent=1 // pred_check_branch
      %27 = sbr.rel (0) target = $region17
    $region16: #{tpu_custom_call.1} parent=1 // pred_region
      _
    $region17: #{tpu_custom_call.1} parent=1 // pred_fallthru
      _
    // Predicated region
    $region18: #{tpu_custom_call.1} parent=1 // pred_check
      _
    $region19: #{tpu_custom_call.1} parent=1 // pred_check_branch
      %29 = sbr.rel (0) target = $region21
    $region20: #{tpu_custom_call.1} parent=1 // pred_region
      _
    $region21: #{tpu_custom_call.1} parent=1 // pred_fallthru
      _
    // Predicated region
    $region22: #{tpu_custom_call.1} parent=1 // pred_check
      _
    $region23: #{tpu_custom_call.1} parent=1 // pred_check_branch
      %31 = sbr.rel (0) target = $region25
    $region24: #{tpu_custom_call.1} parent=1 // pred_region
      _
    $region25: #{tpu_custom_call.1} parent=1 // pred_fallthru
      _
    // Predicated region
    $region26: #{tpu_custom_call.1} parent=1 // pred_check
      _
    $region27: #{tpu_custom_call.1} parent=1 // pred_check_branch
      %33 = sbr.rel (0) target = $region29
    $region28: #{tpu_custom_call.1} parent=1 // pred_region
      _
    $region29: #{tpu_custom_call.1} parent=1 // pred_fallthru
      _
    // Predicated region
    $region30: #{tpu_custom_call.1} parent=1 // pred_check
      _
    $region31: #{tpu_custom_call.1} parent=1 // pred_check_branch
      %35 = sbr.rel (0) target = $region33
    $region32: #{tpu_custom_call.1} parent=1 // pred_region
      %37 = vsyncadd [#allocation4], 0
      %s38 = sshll.u32 %s7, 4
      %s39 = int_to_ptr.hbm [resolvable:$true] %s38
      %s40 = sshll.u32 [#allocation3], 4
      %s41 = int_to_ptr.vmem [resolvable:$true] %s40
      %46 = dma.hbm_to_vmem [thread:$0]  %s39, 256, %s41, [#allocation4], 64, 64, 4
    $region33: #{tpu_custom_call.1} parent=1 // pred_fallthru
      _
    // Predicated region
    $region34: #{tpu_custom_call.1} parent=1 // pred_check
      _
    $region35: #{tpu_custom_call.1} parent=1 // pred_check_branch
      %48 = sbr.rel (0) target = $region37
    $region36: #{tpu_custom_call.1} parent=1 // pred_region
      _
    $region37: #{tpu_custom_call.1} parent=1 // pred_fallthru
      _
    // Predicated region
    $region38: #{tpu_custom_call.1} parent=1 // pred_check
      _
    $region39: #{tpu_custom_call.1} parent=1 // pred_check_branch
      %50 = sbr.rel (0) target = $region41
    $region40: #{tpu_custom_call.1} parent=1 // pred_region
      _
    $region41: #{tpu_custom_call.1} parent=1 // pred_fallthru
      _
    // Predicated region
    $region42: #{tpu_custom_call.1} parent=1 // pred_check
      _
    $region43: #{tpu_custom_call.1} parent=1 // pred_check_branch
      %52 = sbr.rel (0) target = $region45
    $region44: #{tpu_custom_call.1} parent=1 // pred_region
      _
    $region45: #{tpu_custom_call.1} parent=1 // pred_fallthru
      _
    // Predicated region
    $region46: #{tpu_custom_call.1} parent=1 // pred_check
      _
    $region47: #{tpu_custom_call.1} parent=1 // pred_check_branch
      %54 = sbr.rel (0) target = $region49
    $region48: #{tpu_custom_call.1} parent=1 // pred_region
      _
    $region49: #{tpu_custom_call.1} parent=1 // pred_fallthru
      _
    // Predicated region
    $region50: #{tpu_custom_call.1} parent=1 // pred_check
      _
    $region51: #{tpu_custom_call.1} parent=1 // pred_check_branch
      %56 = sbr.rel (0) target = $region53
    $region52: #{tpu_custom_call.1} parent=1 // pred_region
      _
    $region53: #{tpu_custom_call.1} parent=1 // pred_fallthru
      _
    // Predicated region
    $region54: #{tpu_custom_call.1} parent=1 // pred_check
      _
    $region55: #{tpu_custom_call.1} parent=1 // pred_check_branch
      %58 = sbr.rel (0) target = $region57
    $region56: #{tpu_custom_call.1} parent=1 // pred_region
      %60 = dma.done [#allocation4], 256
    $region57: #{tpu_custom_call.1} parent=1 // pred_fallthru
      _
    %v62 = vld [vmem:[%s0] sm:$0xff]
    %v63 = vld [vmem:[%s0 + $0x8] sm:$0xff]
    %v64 = vpack.c.bf16 %v63, %v62
    %v65 = vld [vmem:[%s1] sm:$0xf]
    %v66 = vld [vmem:[%s1 + $0x4] sm:$0xf]
    %v67 = vld [vmem:[%s1 + $0x8] sm:$0xf]
    %v68 = vld [vmem:[%s1 + $0xc] sm:$0xf]
    %v69 = vld [vmem:[%s2] sm:$0x1]
    %v71 = vperm.slane %v69, 0
    %v77 = vunpack.c.l.b16 %v65
    %v78 = vunpack.c.l.b16 %v66
    %v79 = vunpack.c.l.b16 %v67
    %v80 = vunpack.c.l.b16 %v68
    %v81 = vpack.c.b16 %v78, %v77
    %v82 = vpack.c.b16 %v80, %v79
    %vm85 = vcmask 261120
    %v87 = vsel %vm85, %v64, 0
    %89 = vmatpush.bf16.msra.mxu0 0
    %90 = vmatpush.bf16.msra.mxu0 0
    %91 = vmatpush.bf16.msra.mxu0 0
    %92 = vmatpush.bf16.msra.mxu0 0
    %93 = vmatpush.bf16.msra.mxu0 0
    %94 = vmatpush.bf16.msra.mxu0 0
    %95 = vmatpush.bf16.msra.mxu0 %v82
    %96 = vmatpush.bf16.msra.mxu0 %v81
    %97 = vmatmul.bf16.gmra.mxu0 %v87
    %v98 = vpop.f32.mrf.mxu0
    %v99 = vadd.f32 %v71, %v98
    %v100 = vpop.f32.mrf.mxu0
    %v101 = vadd.f32 %v71, %v100
    %102 = vdwg.mxu0
    %v103 = vpack.c.bf16 %v99, %v99
    %v104 = vpack.c.bf16 %v101, %v101
    %v106 = vunpack.c.l.b16 %v103
    %v107 = vpack.c.b16 %v106, %v106
    %108 = vrot.lane.b32.xlu0 %v107, 96
    %v109 = vpop.permute.xlu0 %108
    %vm110 = vcmask 64512
    %v112 = vsel %vm110, %v103, 0
    %v115 = vsel %vm110, %v109, 0
    %117 = vmatpush.bf16.xpose.msra.mxu0 0
    %118 = vmatpush.bf16.xpose.msra.mxu0 0
    %119 = vmatpush.bf16.xpose.msra.mxu0 0
    %120 = vmatpush.bf16.xpose.msra.mxu0 0
    %121 = vmatpush.bf16.xpose.msra.mxu0 0
    %122 = vmatpush.bf16.xpose.msra.mxu0 0
    %123 = vmatpush.bf16.xpose.msra.mxu0 0
    %124 = vmatpush.bf16.xpose.msra.mxu0 %v115
    %125 = vmatmul.bf16.gmra.mxu0 %v112
    %v126 = vpop.f32.mrf.mxu0
    %v127 = vadd.f32 0.0, %v126
    %v128 = vpop.f32.mrf.mxu0
    %129 = vdwg.mxu0
    %v131 = vunpack.c.l.b16 %v104
    %v132 = vpack.c.b16 %v131, %v131
    %133 = vrot.lane.b32.xlu0 %v132, 96
    %v134 = vpop.permute.xlu0 %133
    %v136 = vsel %vm110, %v104, 0
    %v139 = vsel %vm110, %v134, 0
    %141 = vmatpush.bf16.xpose.msra.mxu0 0
    %142 = vmatpush.bf16.xpose.msra.mxu0 0
    %143 = vmatpush.bf16.xpose.msra.mxu0 0
    %144 = vmatpush.bf16.xpose.msra.mxu0 0
    %145 = vmatpush.bf16.xpose.msra.mxu0 0
    %146 = vmatpush.bf16.xpose.msra.mxu0 0
    %147 = vmatpush.bf16.xpose.msra.mxu0 0
    %148 = vmatpush.bf16.xpose.msra.mxu0 %v139
    %149 = vmatmul.bf16.gmra.mxu0 %v136
    %v150 = vpop.f32.mrf.mxu0
    %v151 = vadd.f32 0.0, %v150
    %v152 = vpop.f32.mrf.mxu0
    %153 = vdwg.mxu0
    %v154 = vsel %vm110, %v127, -inf
    %155 = vmax.xlane.f32.xlu0 %v154
    %v156 = vpop.xlane.xlu0 %155
    %v157 = vsel %vm110, %v151, -inf
    %158 = vmax.xlane.f32.xlu0 %v157
    %v159 = vpop.xlane.xlu0 %158
    %v160 = vsub.f32 %v127, %v156
    %v161 = vsub.f32 %v151, %v159
    %v162 = vmul.f32 %v160, 1.442695
    %v163 = vpow.pop %v162
    %v164 = vmul.f32 %v161, 1.442695
    %v165 = vpow.pop %v164
    %v166 = vsel %vm110, %v163, 0.0
    %167 = vadd.xlane.f32.xlu0 %v166
    %v168 = vpop.xlane.xlu0 %167
    %v169 = vsel %vm110, %v165, 0.0
    %170 = vadd.xlane.f32.xlu0 %v169
    %v171 = vpop.xlane.xlu0 %170
    %v172 = vrcp.pop %v168
    %v173 = vrcp.pop %v171
    %v174 = vmul.f32 %v163, %v172
    %v175 = vmul.f32 %v165, %v173
    %v176 = vpack.c.bf16 %v174, %v174
    %v177 = vpack.c.bf16 %v175, %v175
    %178 = vrot.lane.b32.xlu0 %v107, 64
    %v179 = vpop.permute.xlu0 %178
    %v181 = vsel %vm110, %v176, 0
    %vm183 = vcmask 1043456
    %v185 = vsel %vm183, %v179, 0
    %187 = vmatpush.bf16.msra.mxu0 0
    %188 = vmatpush.bf16.msra.mxu0 0
    %189 = vmatpush.bf16.msra.mxu0 0
    %190 = vmatpush.bf16.msra.mxu0 0
    %191 = vmatpush.bf16.msra.mxu0 0
    %192 = vmatpush.bf16.msra.mxu0 0
    %193 = vmatpush.bf16.msra.mxu0 0
    %194 = vmatpush.bf16.msra.mxu0 %v185
    %195 = vmatmul.bf16.gmra.mxu0 %v181
    %v196 = vpop.f32.mrf.mxu0
    %v197 = vadd.f32 0.0, %v196
    %v198 = vpop.f32.mrf.mxu0
    %199 = vdwg.mxu0
    %200 = vrot.lane.b32.xlu0 %v132, 64
    %v201 = vpop.permute.xlu0 %200
    %v203 = vsel %vm110, %v177, 0
    %v206 = vsel %vm183, %v201, 0
    %208 = vmatpush.bf16.msra.mxu0 0
    %209 = vmatpush.bf16.msra.mxu0 0
    %210 = vmatpush.bf16.msra.mxu0 0
    %211 = vmatpush.bf16.msra.mxu0 0
    %212 = vmatpush.bf16.msra.mxu0 0
    %213 = vmatpush.bf16.msra.mxu0 0
    %214 = vmatpush.bf16.msra.mxu0 0
    %215 = vmatpush.bf16.msra.mxu0 %v206
    %216 = vmatmul.bf16.gmra.mxu0 %v203
    %v217 = vpop.f32.mrf.mxu0
    %v218 = vadd.f32 0.0, %v217
    %v219 = vpop.f32.mrf.mxu0
    %220 = vdwg.mxu0
    %221 = vst.msk [vmem:[#allocation2] sm:$0xff] %vm110, %v197
    %222 = vst.msk [vmem:[#allocation2 + $0x8] sm:$0xff] %vm110, %v218
    %223 = vrot.lane.b32.xlu0 %v107, 120
    %v224 = vpop.permute.xlu0 %223
    %225 = vrot.lane.b32.xlu0 %v107, 88
    %v226 = vpop.permute.xlu0 %225
    %v228 = vsel %vm110, %v224, 0
    %v231 = vsel %vm110, %v226, 0
    %233 = vmatpush.bf16.xpose.msra.mxu0 0
    %234 = vmatpush.bf16.xpose.msra.mxu0 0
    %235 = vmatpush.bf16.xpose.msra.mxu0 0
    %236 = vmatpush.bf16.xpose.msra.mxu0 0
    %237 = vmatpush.bf16.xpose.msra.mxu0 0
    %238 = vmatpush.bf16.xpose.msra.mxu0 0
    %239 = vmatpush.bf16.xpose.msra.mxu0 0
    %240 = vmatpush.bf16.xpose.msra.mxu0 %v231
    %241 = vmatmul.bf16.gmra.mxu0 %v228
    %v242 = vpop.f32.mrf.mxu0
    %v243 = vadd.f32 0.0, %v242
    %v244 = vpop.f32.mrf.mxu0
    %245 = vdwg.mxu0
    %246 = vrot.lane.b32.xlu0 %v132, 120
    %v247 = vpop.permute.xlu0 %246
    %248 = vrot.lane.b32.xlu0 %v132, 88
    %v249 = vpop.permute.xlu0 %248
    %v251 = vsel %vm110, %v247, 0
    %v254 = vsel %vm110, %v249, 0
    %256 = vmatpush.bf16.xpose.msra.mxu0 0
    %257 = vmatpush.bf16.xpose.msra.mxu0 0
    %258 = vmatpush.bf16.xpose.msra.mxu0 0
    %259 = vmatpush.bf16.xpose.msra.mxu0 0
    %260 = vmatpush.bf16.xpose.msra.mxu0 0
    %261 = vmatpush.bf16.xpose.msra.mxu0 0
    %262 = vmatpush.bf16.xpose.msra.mxu0 0
    %263 = vmatpush.bf16.xpose.msra.mxu0 %v254
    %264 = vmatmul.bf16.gmra.mxu0 %v251
    %v265 = vpop.f32.mrf.mxu0
    %v266 = vadd.f32 0.0, %v265
    %v267 = vpop.f32.mrf.mxu0
    %268 = vdwg.mxu0
    %v269 = vsel %vm110, %v243, -inf
    %270 = vmax.xlane.f32.xlu0 %v269
    %v271 = vpop.xlane.xlu0 %270
    %v272 = vsel %vm110, %v266, -inf
    %273 = vmax.xlane.f32.xlu0 %v272
    %v274 = vpop.xlane.xlu0 %273
    %v275 = vsub.f32 %v243, %v271
    %v276 = vsub.f32 %v266, %v274
    %v277 = vmul.f32 %v275, 1.442695
    %v278 = vpow.pop %v277
    %v279 = vmul.f32 %v276, 1.442695
    %v280 = vpow.pop %v279
    %v281 = vsel %vm110, %v278, 0.0
    %282 = vadd.xlane.f32.xlu0 %v281
    %v283 = vpop.xlane.xlu0 %282
    %v284 = vsel %vm110, %v280, 0.0
    %285 = vadd.xlane.f32.xlu0 %v284
    %v286 = vpop.xlane.xlu0 %285
    %v287 = vrcp.pop %v283
    %v288 = vrcp.pop %v286
    %v289 = vmul.f32 %v278, %v287
    %v290 = vmul.f32 %v280, %v288
    %v291 = vpack.c.bf16 %v289, %v289
    %v292 = vpack.c.bf16 %v290, %v290
    %293 = vrot.lane.b32.xlu0 %v107, 56
    %v294 = vpop.permute.xlu0 %293
    %v296 = vsel %vm110, %v291, 0
    %v299 = vsel %vm183, %v294, 0
    %301 = vmatpush.bf16.msra.mxu0 0
    %302 = vmatpush.bf16.msra.mxu0 0
    %303 = vmatpush.bf16.msra.mxu0 0
    %304 = vmatpush.bf16.msra.mxu0 0
    %305 = vmatpush.bf16.msra.mxu0 0
    %306 = vmatpush.bf16.msra.mxu0 0
    %307 = vmatpush.bf16.msra.mxu0 0
    %308 = vmatpush.bf16.msra.mxu0 %v299
    %309 = vmatmul.bf16.gmra.mxu0 %v296
    %v310 = vpop.f32.mrf.mxu0
    %v311 = vadd.f32 0.0, %v310
    %v312 = vpop.f32.mrf.mxu0
    %313 = vdwg.mxu0
    %314 = vrot.lane.b32.xlu0 %v132, 56
    %v315 = vpop.permute.xlu0 %314
    %v317 = vsel %vm110, %v292, 0
    %v320 = vsel %vm183, %v315, 0
    %322 = vmatpush.bf16.msra.mxu0 0
    %323 = vmatpush.bf16.msra.mxu0 0
    %324 = vmatpush.bf16.msra.mxu0 0
    %325 = vmatpush.bf16.msra.mxu0 0
    %326 = vmatpush.bf16.msra.mxu0 0
    %327 = vmatpush.bf16.msra.mxu0 0
    %328 = vmatpush.bf16.msra.mxu0 0
    %329 = vmatpush.bf16.msra.mxu0 %v320
    %330 = vmatmul.bf16.gmra.mxu0 %v317
    %v331 = vpop.f32.mrf.mxu0
    %v332 = vadd.f32 0.0, %v331
    %v333 = vpop.f32.mrf.mxu0
    %334 = vdwg.mxu0
    %337 = vrot.lane.b32.xlu0 %v311, 8
    %v338 = vpop.permute.xlu0 %337
    %339 = vrot.lane.b32.xlu0 %v332, 8
    %v340 = vpop.permute.xlu0 %339
    %vm343 = vcmask 130112
    %344 = vst.msk [vmem:[#allocation2] sm:$0xff] %vm343, %v338
    %345 = vst.msk [vmem:[#allocation2 + $0x8] sm:$0xff] %vm343, %v340
    %346 = vrot.lane.b32.xlu0 %v107, 112
    %v347 = vpop.permute.xlu0 %346
    %348 = vrot.lane.b32.xlu0 %v107, 80
    %v349 = vpop.permute.xlu0 %348
    %v351 = vsel %vm110, %v347, 0
    %v354 = vsel %vm110, %v349, 0
    %356 = vmatpush.bf16.xpose.msra.mxu0 0
    %357 = vmatpush.bf16.xpose.msra.mxu0 0
    %358 = vmatpush.bf16.xpose.msra.mxu0 0
    %359 = vmatpush.bf16.xpose.msra.mxu0 0
    %360 = vmatpush.bf16.xpose.msra.mxu0 0
    %361 = vmatpush.bf16.xpose.msra.mxu0 0
    %362 = vmatpush.bf16.xpose.msra.mxu0 0
    %363 = vmatpush.bf16.xpose.msra.mxu0 %v354
    %364 = vmatmul.bf16.gmra.mxu0 %v351
    %v365 = vpop.f32.mrf.mxu0
    %v366 = vadd.f32 0.0, %v365
    %v367 = vpop.f32.mrf.mxu0
    %368 = vdwg.mxu0
    %369 = vrot.lane.b32.xlu0 %v132, 112
    %v370 = vpop.permute.xlu0 %369
    %371 = vrot.lane.b32.xlu0 %v132, 80
    %v372 = vpop.permute.xlu0 %371
    %v374 = vsel %vm110, %v370, 0
    %v377 = vsel %vm110, %v372, 0
    %379 = vmatpush.bf16.xpose.msra.mxu0 0
    %380 = vmatpush.bf16.xpose.msra.mxu0 0
    %381 = vmatpush.bf16.xpose.msra.mxu0 0
    %382 = vmatpush.bf16.xpose.msra.mxu0 0
    %383 = vmatpush.bf16.xpose.msra.mxu0 0
    %384 = vmatpush.bf16.xpose.msra.mxu0 0
    %385 = vmatpush.bf16.xpose.msra.mxu0 0
    %386 = vmatpush.bf16.xpose.msra.mxu0 %v377
    %387 = vmatmul.bf16.gmra.mxu0 %v374
    %v388 = vpop.f32.mrf.mxu0
    %v389 = vadd.f32 0.0, %v388
    %v390 = vpop.f32.mrf.mxu0
    %391 = vdwg.mxu0
    %v392 = vsel %vm110, %v366, -inf
    %393 = vmax.xlane.f32.xlu0 %v392
    %v394 = vpop.xlane.xlu0 %393
    %v395 = vsel %vm110, %v389, -inf
    %396 = vmax.xlane.f32.xlu0 %v395
    %v397 = vpop.xlane.xlu0 %396
    %v398 = vsub.f32 %v366, %v394
    %v399 = vsub.f32 %v389, %v397
    %v400 = vmul.f32 %v398, 1.442695
    %v401 = vpow.pop %v400
    %v402 = vmul.f32 %v399, 1.442695
    %v403 = vpow.pop %v402
    %v404 = vsel %vm110, %v401, 0.0
    %405 = vadd.xlane.f32.xlu0 %v404
    %v406 = vpop.xlane.xlu0 %405
    %v407 = vsel %vm110, %v403, 0.0
    %408 = vadd.xlane.f32.xlu0 %v407
    %v409 = vpop.xlane.xlu0 %408
    %v410 = vrcp.pop %v406
    %v411 = vrcp.pop %v409
    %v412 = vmul.f32 %v401, %v410
    %v413 = vmul.f32 %v403, %v411
    %v414 = vpack.c.bf16 %v412, %v412
    %v415 = vpack.c.bf16 %v413, %v413
    %416 = vrot.lane.b32.xlu0 %v107, 48
    %v417 = vpop.permute.xlu0 %416
    %v419 = vsel %vm110, %v414, 0
    %v422 = vsel %vm183, %v417, 0
    %424 = vmatpush.bf16.msra.mxu0 0
    %425 = vmatpush.bf16.msra.mxu0 0
    %426 = vmatpush.bf16.msra.mxu0 0
    %427 = vmatpush.bf16.msra.mxu0 0
    %428 = vmatpush.bf16.msra.mxu0 0
    %429 = vmatpush.bf16.msra.mxu0 0
    %430 = vmatpush.bf16.msra.mxu0 0
    %431 = vmatpush.bf16.msra.mxu0 %v422
    %432 = vmatmul.bf16.gmra.mxu0 %v419
    %v433 = vpop.f32.mrf.mxu0
    %v434 = vadd.f32 0.0, %v433
    %v435 = vpop.f32.mrf.mxu0
    %436 = vdwg.mxu0
    %437 = vrot.lane.b32.xlu0 %v132, 48
    %v438 = vpop.permute.xlu0 %437
    %v440 = vsel %vm110, %v415, 0
    %v443 = vsel %vm183, %v438, 0
    %445 = vmatpush.bf16.msra.mxu0 0
    %446 = vmatpush.bf16.msra.mxu0 0
    %447 = vmatpush.bf16.msra.mxu0 0
    %448 = vmatpush.bf16.msra.mxu0 0
    %449 = vmatpush.bf16.msra.mxu0 0
    %450 = vmatpush.bf16.msra.mxu0 0
    %451 = vmatpush.bf16.msra.mxu0 0
    %452 = vmatpush.bf16.msra.mxu0 %v443
    %453 = vmatmul.bf16.gmra.mxu0 %v440
    %v454 = vpop.f32.mrf.mxu0
    %v455 = vadd.f32 0.0, %v454
    %v456 = vpop.f32.mrf.mxu0
    %457 = vdwg.mxu0
    %460 = vrot.lane.b32.xlu0 %v434, 16
    %v461 = vpop.permute.xlu0 %460
    %462 = vrot.lane.b32.xlu0 %v455, 16
    %v463 = vpop.permute.xlu0 %462
    %vm466 = vcmask 195712
    %467 = vst.msk [vmem:[#allocation2] sm:$0xff] %vm466, %v461
    %468 = vst.msk [vmem:[#allocation2 + $0x8] sm:$0xff] %vm466, %v463
    %469 = vrot.lane.b32.xlu0 %v107, 104
    %v470 = vpop.permute.xlu0 %469
    %471 = vrot.lane.b32.xlu0 %v107, 72
    %v472 = vpop.permute.xlu0 %471
    %v474 = vsel %vm110, %v470, 0
    %v477 = vsel %vm110, %v472, 0
    %479 = vmatpush.bf16.xpose.msra.mxu0 0
    %480 = vmatpush.bf16.xpose.msra.mxu0 0
    %481 = vmatpush.bf16.xpose.msra.mxu0 0
    %482 = vmatpush.bf16.xpose.msra.mxu0 0
    %483 = vmatpush.bf16.xpose.msra.mxu0 0
    %484 = vmatpush.bf16.xpose.msra.mxu0 0
    %485 = vmatpush.bf16.xpose.msra.mxu0 0
    %486 = vmatpush.bf16.xpose.msra.mxu0 %v477
    %487 = vmatmul.bf16.gmra.mxu0 %v474
    %v488 = vpop.f32.mrf.mxu0
    %v489 = vadd.f32 0.0, %v488
    %v490 = vpop.f32.mrf.mxu0
    %491 = vdwg.mxu0
    %492 = vrot.lane.b32.xlu0 %v132, 104
    %v493 = vpop.permute.xlu0 %492
    %494 = vrot.lane.b32.xlu0 %v132, 72
    %v495 = vpop.permute.xlu0 %494
    %v497 = vsel %vm110, %v493, 0
    %v500 = vsel %vm110, %v495, 0
    %502 = vmatpush.bf16.xpose.msra.mxu0 0
    %503 = vmatpush.bf16.xpose.msra.mxu0 0
    %504 = vmatpush.bf16.xpose.msra.mxu0 0
    %505 = vmatpush.bf16.xpose.msra.mxu0 0
    %506 = vmatpush.bf16.xpose.msra.mxu0 0
    %507 = vmatpush.bf16.xpose.msra.mxu0 0
    %508 = vmatpush.bf16.xpose.msra.mxu0 0
    %509 = vmatpush.bf16.xpose.msra.mxu0 %v500
    %510 = vmatmul.bf16.gmra.mxu0 %v497
    %v511 = vpop.f32.mrf.mxu0
    %v512 = vadd.f32 0.0, %v511
    %v513 = vpop.f32.mrf.mxu0
    %514 = vdwg.mxu0
    %v515 = vsel %vm110, %v489, -inf
    %516 = vmax.xlane.f32.xlu0 %v515
    %v517 = vpop.xlane.xlu0 %516
    %v518 = vsel %vm110, %v512, -inf
    %519 = vmax.xlane.f32.xlu0 %v518
    %v520 = vpop.xlane.xlu0 %519
    %v521 = vsub.f32 %v489, %v517
    %v522 = vsub.f32 %v512, %v520
    %v523 = vmul.f32 %v521, 1.442695
    %v524 = vpow.pop %v523
    %v525 = vmul.f32 %v522, 1.442695
    %v526 = vpow.pop %v525
    %v527 = vsel %vm110, %v524, 0.0
    %528 = vadd.xlane.f32.xlu0 %v527
    %v529 = vpop.xlane.xlu0 %528
    %v530 = vsel %vm110, %v526, 0.0
    %531 = vadd.xlane.f32.xlu0 %v530
    %v532 = vpop.xlane.xlu0 %531
    %v533 = vrcp.pop %v529
    %v534 = vrcp.pop %v532
    %v535 = vmul.f32 %v524, %v533
    %v536 = vmul.f32 %v526, %v534
    %v537 = vpack.c.bf16 %v535, %v535
    %v538 = vpack.c.bf16 %v536, %v536
    %539 = vrot.lane.b32.xlu0 %v107, 40
    %v540 = vpop.permute.xlu0 %539
    %v542 = vsel %vm110, %v537, 0
    %v545 = vsel %vm183, %v540, 0
    %547 = vmatpush.bf16.msra.mxu0 0
    %548 = vmatpush.bf16.msra.mxu0 0
    %549 = vmatpush.bf16.msra.mxu0 0
    %550 = vmatpush.bf16.msra.mxu0 0
    %551 = vmatpush.bf16.msra.mxu0 0
    %552 = vmatpush.bf16.msra.mxu0 0
    %553 = vmatpush.bf16.msra.mxu0 0
    %554 = vmatpush.bf16.msra.mxu0 %v545
    %555 = vmatmul.bf16.gmra.mxu0 %v542
    %v556 = vpop.f32.mrf.mxu0
    %v557 = vadd.f32 0.0, %v556
    %v558 = vpop.f32.mrf.mxu0
    %559 = vdwg.mxu0
    %560 = vrot.lane.b32.xlu0 %v132, 40
    %v561 = vpop.permute.xlu0 %560
    %v563 = vsel %vm110, %v538, 0
    %v566 = vsel %vm183, %v561, 0
    %568 = vmatpush.bf16.msra.mxu0 0
    %569 = vmatpush.bf16.msra.mxu0 0
    %570 = vmatpush.bf16.msra.mxu0 0
    %571 = vmatpush.bf16.msra.mxu0 0
    %572 = vmatpush.bf16.msra.mxu0 0
    %573 = vmatpush.bf16.msra.mxu0 0
    %574 = vmatpush.bf16.msra.mxu0 0
    %575 = vmatpush.bf16.msra.mxu0 %v566
    %576 = vmatmul.bf16.gmra.mxu0 %v563
    %v577 = vpop.f32.mrf.mxu0
    %v578 = vadd.f32 0.0, %v577
    %v579 = vpop.f32.mrf.mxu0
    %580 = vdwg.mxu0
    %583 = vrot.lane.b32.xlu0 %v557, 24
    %v584 = vpop.permute.xlu0 %583
    %585 = vrot.lane.b32.xlu0 %v578, 24
    %v586 = vpop.permute.xlu0 %585
    %vm589 = vcmask 261312
    %590 = vst.msk [vmem:[#allocation2] sm:$0xff] %vm589, %v584
    %591 = vst.msk [vmem:[#allocation2 + $0x8] sm:$0xff] %vm589, %v586
    %v592 = vld [vmem:[#allocation2] sm:$0xff]
    %v593 = vld [vmem:[#allocation2 + $0x8] sm:$0xff]
    %v594 = vpack.c.bf16 %v593, %v592
    %v595 = vld [vmem:[%s3] sm:$0xf]
    %v596 = vld [vmem:[%s3 + $0x4] sm:$0xf]
    %v597 = vld [vmem:[%s3 + $0x8] sm:$0xf]
    %v598 = vld [vmem:[%s3 + $0xc] sm:$0xf]
    %v599 = vld [vmem:[%s4] sm:$0x1]
    %v601 = vperm.slane %v599, 0
    %v607 = vunpack.c.l.b16 %v595
    %v608 = vunpack.c.l.b16 %v596
    %v609 = vunpack.c.l.b16 %v597
    %v610 = vunpack.c.l.b16 %v598
    %v611 = vpack.c.b16 %v608, %v607
    %v612 = vpack.c.b16 %v610, %v609
    %v616 = vsel %vm85, %v594, 0
    %618 = vmatpush.bf16.msra.mxu0 0
    %619 = vmatpush.bf16.msra.mxu0 0
    %620 = vmatpush.bf16.msra.mxu0 0
    %621 = vmatpush.bf16.msra.mxu0 0
    %622 = vmatpush.bf16.msra.mxu0 0
    %623 = vmatpush.bf16.msra.mxu0 0
    %624 = vmatpush.bf16.msra.mxu0 %v612
    %625 = vmatpush.bf16.msra.mxu0 %v611
    %626 = vmatmul.bf16.gmra.mxu0 %v616
    %v627 = vpop.f32.mrf.mxu0
    %v628 = vadd.f32 %v601, %v627
    %v629 = vpop.f32.mrf.mxu0
    %v630 = vadd.f32 %v601, %v629
    %631 = vdwg.mxu0
    %v632 = vadd.f32 %v62, %v628
    %v633 = vadd.f32 %v63, %v630
    %v634 = vld [vmem:[%s5] sm:$0x1]
    %v635 = vld [vmem:[%s6] sm:$0x1]
    %v636 = vsel %vm85, %v632, 0.0
    %637 = vadd.xlane.f32.xlu0 %v636
    %v638 = vpop.xlane.xlu0 %637
    %v639 = vsel %vm85, %v633, 0.0
    %640 = vadd.xlane.f32.xlu0 %v639
    %v641 = vpop.xlane.xlu0 %640
    %v642 = vrcp.pop 32.0
    %v643 = vmul.f32 32.0, %v642
    %v644 = vsub.f32 1.0, %v643
    %v645 = vmul.f32 %v642, %v644
    %v646 = vadd.f32 %v642, %v645
    %vm647 = vweird.f32 %v642
    %v648 = vsel %vm647, %v642, %v646
    %v649 = vmul.f32 %v638, %v648
    %v650 = vmul.f32 %v641, %v648
    %v651 = vsub.f32 %v632, %v649
    %v652 = vsub.f32 %v633, %v650
    %v653 = vmul.f32 %v651, %v651
    %v654 = vmul.f32 %v652, %v652
    %v655 = vsel %vm85, %v653, 0.0
    %656 = vadd.xlane.f32.xlu0 %v655
    %v657 = vpop.xlane.xlu0 %656
    %v658 = vsel %vm85, %v654, 0.0
    %659 = vadd.xlane.f32.xlu0 %v658
    %v660 = vpop.xlane.xlu0 %659
    %v661 = vmul.f32 %v657, %v648
    %v662 = vmul.f32 %v660, %v648
    %v663 = vadd.f32 %v661, 1e-05
    %v664 = vadd.f32 %v662, 1e-05
    %v665 = vrsqrt.pop %v663
    %v666 = vmul.f32 %v665, %v663
    %v667 = vmul.f32 %v666, %v665
    %v668 = vmul.f32 0.5, %v667
    %v669 = vsub.f32 1.5, %v668
    %v670 = vmul.f32 %v665, %v669
    %vm671 = vweird.f32 %v663
    %vm672 = vweird.f32 %v665
    %vm673 = vmor %vm671, %vm672
    %v674 = vsel %vm673, %v665, %v670
    %v675 = vrsqrt.pop %v664
    %v676 = vmul.f32 %v675, %v664
    %v677 = vmul.f32 %v676, %v675
    %v678 = vmul.f32 0.5, %v677
    %v679 = vsub.f32 1.5, %v678
    %v680 = vmul.f32 %v675, %v679
    %vm681 = vweird.f32 %v664
    %vm682 = vweird.f32 %v675
    %vm683 = vmor %vm681, %vm682
    %v684 = vsel %vm683, %v675, %v680
    %v685 = vmul.f32 %v651, %v674
    %v686 = vmul.f32 %v652, %v684
    %v688 = vperm.slane %v634, 0
    %v690 = vmul.f32 %v685, %v688
    %v691 = vmul.f32 %v686, %v688
    %v693 = vperm.slane %v635, 0
    %v695 = vadd.f32 %v690, %v693
    %v696 = vadd.f32 %v691, %v693
    %v697 = vpack.c.bf16 %v696, %v695
    %v698 = vld [vmem:[#allocation3] sm:$0xf]
    %v699 = vld [vmem:[#allocation3 + $0x4] sm:$0xf]
    %v700 = vld [vmem:[#allocation3 + $0x8] sm:$0xf]
    %v701 = vld [vmem:[#allocation3 + $0xc] sm:$0xf]
    %v702 = vld [vmem:[%s8] sm:$0x1]
    %v704 = vperm.slane %v702, 0
    %v710 = vunpack.c.l.b16 %v698
    %v711 = vunpack.c.l.b16 %v699
    %v712 = vunpack.c.l.b16 %v700
    %v713 = vunpack.c.l.b16 %v701
    %v714 = vpack.c.b16 %v711, %v710
    %v715 = vpack.c.b16 %v713, %v712
    %v719 = vsel %vm85, %v697, 0
    %721 = vmatpush.bf16.msra.mxu0 0
    %722 = vmatpush.bf16.msra.mxu0 0
    %723 = vmatpush.bf16.msra.mxu0 0
    %724 = vmatpush.bf16.msra.mxu0 0
    %725 = vmatpush.bf16.msra.mxu0 0
    %726 = vmatpush.bf16.msra.mxu0 0
    %727 = vmatpush.bf16.msra.mxu0 %v715
    %728 = vmatpush.bf16.msra.mxu0 %v714
    %729 = vmatmul.bf16.gmra.mxu0 %v719
    %v730 = vpop.f32.mrf.mxu0
    %v731 = vadd.f32 %v704, %v730
    %v732 = vpop.f32.mrf.mxu0
    %v733 = vadd.f32 %v704, %v732
    %734 = vdwg.mxu0
    %v735 = vmax.f32 %v731, 0.0
    %v736 = vmax.f32 %v733, 0.0
    %v737 = vpack.c.bf16 %v736, %v735
    %v738 = vld [vmem:[%s9] sm:$0xf]
    %v739 = vld [vmem:[%s9 + $0x4] sm:$0xf]
    %v740 = vld [vmem:[%s9 + $0x8] sm:$0xf]
    %v741 = vld [vmem:[%s9 + $0xc] sm:$0xf]
    %v742 = vld [vmem:[%s9 + $0x10] sm:$0xf]
    %v743 = vld [vmem:[%s9 + $0x14] sm:$0xf]
    %v744 = vld [vmem:[%s9 + $0x18] sm:$0xf]
    %v745 = vld [vmem:[%s9 + $0x1c] sm:$0xf]
    %v746 = vld [vmem:[%s10] sm:$0x1]
    %v748 = vperm.slane %v746, 0
    %v758 = vunpack.c.l.b16 %v738
    %v759 = vunpack.c.l.b16 %v739
    %v760 = vunpack.c.l.b16 %v740
    %v761 = vunpack.c.l.b16 %v741
    %v762 = vunpack.c.l.b16 %v742
    %v763 = vunpack.c.l.b16 %v743
    %v764 = vunpack.c.l.b16 %v744
    %v765 = vunpack.c.l.b16 %v745
    %v766 = vpack.c.b16 %v759, %v758
    %v767 = vpack.c.b16 %v761, %v760
    %v768 = vpack.c.b16 %v763, %v762
    %v769 = vpack.c.b16 %v765, %v764
    %vm774 = vcmask 523264
    %v776 = vsel %vm774, %v737, 0
    %778 = vmatpush.bf16.msra.mxu0 0
    %779 = vmatpush.bf16.msra.mxu0 0
    %780 = vmatpush.bf16.msra.mxu0 0
    %781 = vmatpush.bf16.msra.mxu0 0
    %782 = vmatpush.bf16.msra.mxu0 %v769
    %783 = vmatpush.bf16.msra.mxu0 %v768
    %784 = vmatpush.bf16.msra.mxu0 %v767
    %785 = vmatpush.bf16.msra.mxu0 %v766
    %786 = vmatmul.bf16.gmra.mxu0 %v776
    %v787 = vpop.f32.mrf.mxu0
    %v788 = vadd.f32 %v748, %v787
    %v789 = vpop.f32.mrf.mxu0
    %v790 = vadd.f32 %v748, %v789
    %791 = vdwg.mxu0
    %v792 = vadd.f32 %v695, %v788
    %v793 = vadd.f32 %v696, %v790
    %v794 = vld [vmem:[%s11] sm:$0x1]
    %v795 = vld [vmem:[%s12] sm:$0x1]
    %v796 = vsel %vm85, %v792, 0.0
    %797 = vadd.xlane.f32.xlu0 %v796
    %v798 = vpop.xlane.xlu0 %797
    %v799 = vsel %vm85, %v793, 0.0
    %800 = vadd.xlane.f32.xlu0 %v799
    %v801 = vpop.xlane.xlu0 %800
    %v802 = vmul.f32 %v798, %v648
    %v803 = vmul.f32 %v801, %v648
    %v804 = vsub.f32 %v792, %v802
    %v805 = vsub.f32 %v793, %v803
    %v806 = vmul.f32 %v804, %v804
    %v807 = vmul.f32 %v805, %v805
    %v808 = vsel %vm85, %v806, 0.0
    %809 = vadd.xlane.f32.xlu0 %v808
    %v810 = vpop.xlane.xlu0 %809
    %v811 = vsel %vm85, %v807, 0.0
    %812 = vadd.xlane.f32.xlu0 %v811
    %v813 = vpop.xlane.xlu0 %812
    %v814 = vmul.f32 %v810, %v648
    %v815 = vmul.f32 %v813, %v648
    %v816 = vadd.f32 %v814, 1e-05
    %v817 = vadd.f32 %v815, 1e-05
    %v818 = vrsqrt.pop %v816
    %v819 = vmul.f32 %v818, %v816
    %v820 = vmul.f32 %v819, %v818
    %v821 = vmul.f32 0.5, %v820
    %v822 = vsub.f32 1.5, %v821
    %v823 = vmul.f32 %v818, %v822
    %vm824 = vweird.f32 %v816
    %vm825 = vweird.f32 %v818
    %vm826 = vmor %vm824, %vm825
    %v827 = vsel %vm826, %v818, %v823
    %v828 = vrsqrt.pop %v817
    %v829 = vmul.f32 %v828, %v817
    %v830 = vmul.f32 %v829, %v828
    %v831 = vmul.f32 0.5, %v830
    %v832 = vsub.f32 1.5, %v831
    %v833 = vmul.f32 %v828, %v832
    %vm834 = vweird.f32 %v817
    %vm835 = vweird.f32 %v828
    %vm836 = vmor %vm834, %vm835
    %v837 = vsel %vm836, %v828, %v833
    %v838 = vmul.f32 %v804, %v827
    %v839 = vmul.f32 %v805, %v837
    %v841 = vperm.slane %v794, 0
    %v843 = vmul.f32 %v838, %v841
    %v844 = vmul.f32 %v839, %v841
    %v846 = vperm.slane %v795, 0
    %v848 = vadd.f32 %v843, %v846
    %v849 = vadd.f32 %v844, %v846
    %850 = vst.msk [vmem:[#allocation6] sm:$0xff] %vm85, %v848
    %851 = vst.msk [vmem:[#allocation6 + $0x8] sm:$0xff] %vm85, %v849
    // Predicated region
    $region58: #{tpu_custom_call.1} parent=1 // pred_check
      _
    $region59: #{tpu_custom_call.1} parent=1 // pred_check_branch
      %853 = sbr.rel (0) target = $region61
    $region60: #{tpu_custom_call.1} parent=1 // pred_region
      %855 = vsyncadd [#allocation5], 0
      %s856 = sshll.u32 [#allocation6], 4
      %s857 = int_to_ptr.vmem [resolvable:$true] %s856
      %s858 = sshll.u32 %s13, 4
      %s859 = int_to_ptr.hbm [resolvable:$true] %s858
      %864 = dma.vmem_to_hbm [thread:$0]  %s857, 256, %s859, [#allocation5], 128, 128, 8
    $region61: #{tpu_custom_call.1} parent=1 // pred_fallthru
      _
    // Predicated region
    $region62: #{tpu_custom_call.1} parent=1 // pred_check
      _
    $region63: #{tpu_custom_call.1} parent=1 // pred_check_branch
      %866 = sbr.rel (0) target = $region65
    $region64: #{tpu_custom_call.1} parent=1 // pred_region
      %868 = dma.done [#allocation5], 256
    $region65: #{tpu_custom_call.1} parent=1 // pred_fallthru
      _
    %869 = vsyncpa [#allocation4], 1
    %870 = vsyncpa [#allocation5], 1

</llo_original>
